<compile_context>
chip_gen: v7x
topology: tpu7x:2x2x1
jax: 0.10.0
libtpu: 0.0.40
codegen_flags: <defaults>
</compile_context>

<pallas_src>
import functools

import jax
import jax.numpy as jnp
from jax.experimental import pallas as pl
from jax.experimental.pallas import tpu as pltpu


def _round_up(a, m):
    return ((a + m - 1) // m) * m


# ----------------------------- Pallas kernel ------------------------------

def _mha_kernel(x_ref, w_qkv_ref, b_qkv_ref, w_pT_ref, b_p_ref, o_ref,
                q_sc, k_sc, v_sc, ctx_sc, *, num_heads, head_dim, tq,
                n_valid, inv_scale, bf16_exp):
    E = num_heads * head_dim
    n_pad = k_sc.shape[1]
    qi = pl.program_id(1)

    # ---- once per batch element: fused QKV projection, cache per-head Q/K/V --
    @pl.when(qi == 0)
    def _():
        x = x_ref[0]                                            # (Np, E) bf16
        qkv = jnp.dot(x, w_qkv_ref[...],
                      preferred_element_type=jnp.float32)       # (Np, 3E) f32
        qkv = (qkv + b_qkv_ref[...]).astype(q_sc.dtype)         # bias once, bf16
        # Head-split relayout (head axis -> leading scratch dim).  Runs ONCE per
        # batch element and is amortized over all nq query tiles.
        # TODO(synk): replace the 3H lane-sliced stores with one bulk
        #             pltpu.einshape("n(hd)->hnd", ...) relayout once that path
        #             is validated for small head_dim.
        for h in range(num_heads):
            lo = h * head_dim
            q_sc[h] = qkv[:, lo:lo + head_dim]
            k_sc[h] = qkv[:, E + lo:E + lo + head_dim]
            v_sc[h] = qkv[:, 2 * E + lo:2 * E + lo + head_dim]

    # ---- per query tile: head-batched attention --------------------------------
    if tq == n_pad:                                   # single query tile
        q3 = q_sc[...]                                # (H, tq, d) bf16
    else:
        row = pl.multiple_of(qi * tq, tq)
        q3 = q_sc[:, pl.ds(row, tq), :]               # (H, tq, d) bf16
    k3 = k_sc[...]                                    # (H, Np, d) bf16
    v3 = v_sc[...]                                    # (H, Np, d) bf16

    # energy[h] = q_h @ k_h^T  (contract on d; no explicit transpose)
    energy = jnp.einsum('hqd,hkd->hqk', q3, k3,
                        preferred_element_type=jnp.float32)     # (H, tq, Np) f32

    # Mask padded key columns (only traced when the wrapper actually padded).
    if n_valid < n_pad:
        kidx = jax.lax.broadcasted_iota(jnp.int32, (1, 1, n_pad), 2)
        energy = jnp.where(kidx < n_valid, energy, -1e30)

    # softmax numerator only; normalization is deferred past the PV matmul.
    m = jnp.max(energy, axis=-1, keepdims=True)
    z = energy - m
    if bf16_exp:
        # v6e/v7x: bf16 EUP -> ~2x packed exp throughput; p already bf16 for MXU.
        p = jnp.exp(z.astype(jnp.bfloat16))
        l = jnp.sum(p.astype(jnp.float32), axis=-1, keepdims=True)
    else:
        # v5e and unknown parts: keep exp in f32 (no bf16 EUP).
        pf = jnp.exp(z)
        l = jnp.sum(pf, axis=-1, keepdims=True)
        p = pf.astype(v3.dtype)

    ctx = jnp.einsum('hqk,hkd->hqd', p, v3,
                     preferred_element_type=jnp.float32)        # (H, tq, d) f32
    # Deferred normalization + the module's extra 1/sqrt(E): scale the (H,tq,d)
    # context instead of the (H,tq,N) attention matrix; reciprocal on the EUP.
    ctx = ctx * (pl.reciprocal(l, approx=True) * inv_scale)
    # att_drop(p=0) is the identity.

    # ---- head merge through VMEM (lane-offset stores), then ONE full-width
    # ---- (tq, E) @ (E, E) output projection (K = E, no per-head matmuls) ------
    ctx_b = ctx.astype(ctx_sc.dtype)
    for h in range(num_heads):
        ctx_sc[:, h * head_dim:(h + 1) * head_dim] = ctx_b[h]
    out = jnp.dot(ctx_sc[...], w_pT_ref[...],
                  preferred_element_type=jnp.float32) + b_p_ref[...]   # (tq, E)
    o_ref[0] = out.astype(o_ref.dtype)


# ------------------------------- wrapper -----------------------------------

def mha_pallas(x, w_qkv, b_qkv, w_proj, b_proj, *, num_heads):
    """x: (B, N, E) f32.  w_qkv: (3E, E) PyTorch layout.  w_proj: (E, E)."""
    B, N, E = x.shape
    assert E % num_heads == 0
    d = E // num_heads
    inv_scale = 1.0 / (float(E) ** 0.5)

    # ---- pad the sequence so query tiles are (8,128)-aligned ------------------
    if N > 128:
        n_pad = _round_up(N, 128)
        tq = 128
    else:
        n_pad = _round_up(N, 8)
        tq = n_pad
    nq = n_pad // tq
    if n_pad != N:
        x = jnp.pad(x, ((0, 0), (0, n_pad - N), (0, 0)))
    # TODO(synk): for N >= ~512 add a KV-dimension tile with online softmax
    #             (flash-style) so per-step VMEM is bounded independent of N
    #             (matters for v7x's 64 MiB VMEM).

    # ---- glue: fuse / permute qkv params to match 'b n (h d qkv)' factoring ---
    # column index c of qkv(x) decomposes as c = h*(3d) + d_idx*3 + qkv_idx;
    # re-pack columns as [ Q | K | V ], each head-major (h, d).
    wt = w_qkv.T.reshape(E, num_heads, d, 3)                     # (in, h, d, qkv)
    bt = b_qkv.reshape(num_heads, d, 3)
    w_f = jnp.concatenate([wt[..., i].reshape(E, E) for i in range(3)], axis=1)
    b_f = jnp.concatenate([bt[..., i].reshape(E) for i in range(3)]).reshape(1, 3 * E)
    w_pT = w_proj.T                                              # (E, E)
    b_p = b_proj.reshape(1, E)

    # bf16 operands for the MXU; biases and accumulation stay f32.
    x_b = x.astype(jnp.bfloat16)
    w_f = w_f.astype(jnp.bfloat16)
    w_pT = w_pT.astype(jnp.bfloat16)
    b_f = b_f.astype(jnp.float32)
    b_p = b_p.astype(jnp.float32)

    # bf16 exp only on parts with a bf16 EUP (v6e / v7x); f32 exp elsewhere.
    try:
        kind = jax.devices()[0].device_kind.lower()
    except Exception:
        kind = ""
    bf16_exp = ("v6" in kind) or ("v7" in kind) or ("7x" in kind)

    kernel = functools.partial(_mha_kernel, num_heads=num_heads, head_dim=d,
                               tq=tq, n_valid=N, inv_scale=inv_scale,
                               bf16_exp=bf16_exp)

    out = pl.pallas_call(
        kernel,
        out_shape=jax.ShapeDtypeStruct((B, n_pad, E), jnp.float32),
        grid=(B, nq),
        in_specs=[
            pl.BlockSpec((1, n_pad, E), lambda b, q: (b, 0, 0)),   # x (full seq)
            pl.BlockSpec((E, 3 * E), lambda b, q: (0, 0)),         # fused W_qkv
            pl.BlockSpec((1, 3 * E), lambda b, q: (0, 0)),         # fused b_qkv
            pl.BlockSpec((E, E), lambda b, q: (0, 0)),             # W_proj^T
            pl.BlockSpec((1, E), lambda b, q: (0, 0)),             # b_proj
        ],
        out_specs=pl.BlockSpec((1, tq, E), lambda b, q: (b, q, 0)),
        scratch_shapes=[pltpu.VMEM((num_heads, n_pad, d), jnp.bfloat16)] * 3
                     + [pltpu.VMEM((tq, E), jnp.bfloat16)],
        compiler_params=pltpu.CompilerParams(
            # NOTE: axis 1 must stay sequential on one core (qi==0 scratch fill);
            # never mark it "parallel" without restructuring the QKV projection.
            dimension_semantics=("parallel", "arbitrary"),
            vmem_limit_bytes=32 * 1024 * 1024),
    )(x_b, w_f, b_f, w_pT, b_p)

    if n_pad != N:
        out = out[:, :N, :]
    return out


# --------------------------- pure-JAX reference ----------------------------

def mha_reference(x, w_qkv, b_qkv, w_proj, b_proj, *, num_heads):
    B, N, E = x.shape
    d = E // num_heads
    qkv_lin = x @ w_qkv.T + b_qkv                     # (B, N, 3E)
    # 'b n (h d qkv) -> qkv b h n d'
    qkv = qkv_lin.reshape(B, N, num_heads, d, 3)
    qkv = jnp.transpose(qkv, (4, 0, 2, 1, 3))         # (3, B, h, N, d)
    q, k, v = qkv[0], qkv[1], qkv[2]
    energy = jnp.einsum('bhqd,bhkd->bhqk', q, k)
    att = jax.nn.softmax(energy, axis=-1) / (E ** 0.5)
    out = jnp.einsum('bhal,bhlv->bhav', att, v)       # (B, h, N, d)
    out = jnp.transpose(out, (0, 2, 1, 3)).reshape(B, N, E)
    return out @ w_proj.T + b_proj


# --------------------------------- main ------------------------------------

if __name__ == "__main__":
    # Small but layout-friendly shapes: num_heads matches the module default (8),
    # E = 128 keeps the output stores lane-dense (review item on E % 128).
    B, N, E, H = 2, 8, 128, 8

    key = jax.random.PRNGKey(0)
    kx, kw1, kb1, kw2, kb2 = jax.random.split(key, 5)

    x = jax.random.normal(kx, (B, N, E), dtype=jnp.float32)
    # nn.Linear(emb, 3*emb): weight (3E, E), bias (3E,)
    w_qkv = jax.random.normal(kw1, (3 * E, E), dtype=jnp.float32) * 0.05
    b_qkv = jax.random.normal(kb1, (3 * E,), dtype=jnp.float32) * 0.05
    # nn.Linear(emb, emb)
    w_proj = jax.random.normal(kw2, (E, E), dtype=jnp.float32) * 0.05
    b_proj = jax.random.normal(kb2, (E,), dtype=jnp.float32) * 0.05

    out = mha_pallas(x, w_qkv, b_qkv, w_proj, b_proj, num_heads=H)
    out = jax.block_until_ready(out)

    ref = mha_reference(x, w_qkv, b_qkv, w_proj, b_proj, num_heads=H)
    assert out.shape == (B, N, E)
    # bf16 operands + approx reciprocal -> bf16-appropriate tolerance vs f32 ref.
    assert jnp.allclose(out, ref, atol=2e-2, rtol=2e-2), "mismatch vs reference"

    print("KERNEL_OK")
</pallas_src>

<mosaic_0001>
module attributes {stable_mosaic.version = 11 : i64} {
  func.func @_mha_kernel(%arg0: i32, %arg1: i32, %arg2: memref<1x8x128xbf16, #tpu.memory_space<vmem>>, %arg3: memref<128x384xbf16, #tpu.memory_space<vmem>>, %arg4: memref<1x384xf32, #tpu.memory_space<vmem>>, %arg5: memref<128x128xbf16, #tpu.memory_space<vmem>>, %arg6: memref<1x128xf32, #tpu.memory_space<vmem>>, %arg7: memref<1x8x128xf32, #tpu.memory_space<vmem>>, %arg8: memref<8x8x16xbf16, #tpu.memory_space<vmem>>, %arg9: memref<8x8x16xbf16, #tpu.memory_space<vmem>>, %arg10: memref<8x8x16xbf16, #tpu.memory_space<vmem>>, %arg11: memref<8x128xbf16, #tpu.memory_space<vmem>>) attributes {dimension_semantics = [#tpu.dimension_semantics<parallel>, #tpu.dimension_semantics<arbitrary>], iteration_bounds = array<i64: 2, 1>, scalar_prefetch = 0 : i64, scratch_operands = 4 : i64, tpu.core_type = #tpu.core_type<tc>, window_params = [{transform_indices = @transform_0, window_bounds = array<i64: 1, 8, 128>}, {pipeline_mode = #tpu.pipeline_mode<synchronous>, transform_indices = @transform_1, window_bounds = array<i64: 128, 384>}, {pipeline_mode = #tpu.pipeline_mode<synchronous>, transform_indices = @transform_2, window_bounds = array<i64: 1, 384>}, {pipeline_mode = #tpu.pipeline_mode<synchronous>, transform_indices = @transform_3, window_bounds = array<i64: 128, 128>}, {pipeline_mode = #tpu.pipeline_mode<synchronous>, transform_indices = @transform_4, window_bounds = array<i64: 1, 128>}, {transform_indices = @transform_5, window_bounds = array<i64: 1, 8, 128>}]} {
    %c0_i32 = arith.constant 0 : i32
    %0 = arith.cmpi eq, %arg1, %c0_i32 : i32
    %1 = arith.extui %0 : i1 to i32
    %c0_i32_0 = arith.constant 0 : i32
    %2 = arith.cmpi ne, %1, %c0_i32_0 : i32
    scf.if %2 {
      %c0_32 = arith.constant 0 : index
      %c0_33 = arith.constant 0 : index
      %c0_34 = arith.constant 0 : index
      %55 = vector.load %arg2[%c0_32, %c0_33, %c0_34] : memref<1x8x128xbf16, #tpu.memory_space<vmem>>, vector<1x8x128xbf16>
      %56 = vector.shape_cast %55 : vector<1x8x128xbf16> to vector<8x128xbf16>
      %c0_35 = arith.constant 0 : index
      %c0_36 = arith.constant 0 : index
      %57 = vector.load %arg3[%c0_35, %c0_36] : memref<128x384xbf16, #tpu.memory_space<vmem>>, vector<128x384xbf16>
      %cst_37 = arith.constant dense<0.000000e+00> : vector<8x384xf32>
      %58 = tpu.matmul %56, %57, %cst_37 {dimension_numbers = #tpu.dot_dimension_numbers<[1], [0], [0], [1], [0, 0, 1, 1], [], []>} : vector<8x128xbf16>, vector<128x384xbf16>, vector<8x384xf32> -> vector<8x384xf32>
      %c0_38 = arith.constant 0 : index
      %c0_39 = arith.constant 0 : index
      %59 = vector.load %arg4[%c0_38, %c0_39] : memref<1x384xf32, #tpu.memory_space<vmem>>, vector<1x384xf32>
      %60 = vector.broadcast %59 : vector<1x384xf32> to vector<8x384xf32>
      %61 = arith.addf %58, %60 : vector<8x384xf32>
      %62 = arith.truncf %61 : vector<8x384xf32> to vector<8x384xbf16>
      %63 = vector.extract_strided_slice %62 {offsets = [0, 0], sizes = [8, 16], strides = [1, 1]} : vector<8x384xbf16> to vector<8x16xbf16>
      %c0_40 = arith.constant 0 : index
      %c0_41 = arith.constant 0 : index
      %c0_42 = arith.constant 0 : index
      %64 = vector.load %arg8[%c0_40, %c0_41, %c0_42] : memref<8x8x16xbf16, #tpu.memory_space<vmem>>, vector<1x8x16xbf16>
      %65 = vector.shape_cast %64 : vector<1x8x16xbf16> to vector<8x16xbf16>
      %66 = vector.shape_cast %63 : vector<8x16xbf16> to vector<1x8x16xbf16>
      tpu.vector_store %arg8[%c0_40, %c0_41, %c0_42], %66 {strides = array<i32>} : memref<8x8x16xbf16, #tpu.memory_space<vmem>>, vector<1x8x16xbf16>,
      %67 = vector.extract_strided_slice %62 {offsets = [0, 128], sizes = [8, 16], strides = [1, 1]} : vector<8x384xbf16> to vector<8x16xbf16>
      %c0_43 = arith.constant 0 : index
      %c0_44 = arith.constant 0 : index
      %c0_45 = arith.constant 0 : index
      %68 = vector.load %arg9[%c0_43, %c0_44, %c0_45] : memref<8x8x16xbf16, #tpu.memory_space<vmem>>, vector<1x8x16xbf16>
      %69 = vector.shape_cast %68 : vector<1x8x16xbf16> to vector<8x16xbf16>
      %70 = vector.shape_cast %67 : vector<8x16xbf16> to vector<1x8x16xbf16>
      tpu.vector_store %arg9[%c0_43, %c0_44, %c0_45], %70 {strides = array<i32>} : memref<8x8x16xbf16, #tpu.memory_space<vmem>>, vector<1x8x16xbf16>,
      %71 = vector.extract_strided_slice %62 {offsets = [0, 256], sizes = [8, 16], strides = [1, 1]} : vector<8x384xbf16> to vector<8x16xbf16>
      %c0_46 = arith.constant 0 : index
      %c0_47 = arith.constant 0 : index
      %c0_48 = arith.constant 0 : index
      %72 = vector.load %arg10[%c0_46, %c0_47, %c0_48] : memref<8x8x16xbf16, #tpu.memory_space<vmem>>, vector<1x8x16xbf16>
      %73 = vector.shape_cast %72 : vector<1x8x16xbf16> to vector<8x16xbf16>
      %74 = vector.shape_cast %71 : vector<8x16xbf16> to vector<1x8x16xbf16>
      tpu.vector_store %arg10[%c0_46, %c0_47, %c0_48], %74 {strides = array<i32>} : memref<8x8x16xbf16, #tpu.memory_space<vmem>>, vector<1x8x16xbf16>,
      %75 = vector.extract_strided_slice %62 {offsets = [0, 16], sizes = [8, 16], strides = [1, 1]} : vector<8x384xbf16> to vector<8x16xbf16>
      %c1 = arith.constant 1 : index
      %c0_49 = arith.constant 0 : index
      %c0_50 = arith.constant 0 : index
      %76 = vector.load %arg8[%c1, %c0_49, %c0_50] : memref<8x8x16xbf16, #tpu.memory_space<vmem>>, vector<1x8x16xbf16>
      %77 = vector.shape_cast %76 : vector<1x8x16xbf16> to vector<8x16xbf16>
      %78 = vector.shape_cast %75 : vector<8x16xbf16> to vector<1x8x16xbf16>
      tpu.vector_store %arg8[%c1, %c0_49, %c0_50], %78 {strides = array<i32>} : memref<8x8x16xbf16, #tpu.memory_space<vmem>>, vector<1x8x16xbf16>,
      %79 = vector.extract_strided_slice %62 {offsets = [0, 144], sizes = [8, 16], strides = [1, 1]} : vector<8x384xbf16> to vector<8x16xbf16>
      %c1_51 = arith.constant 1 : index
      %c0_52 = arith.constant 0 : index
      %c0_53 = arith.constant 0 : index
      %80 = vector.load %arg9[%c1_51, %c0_52, %c0_53] : memref<8x8x16xbf16, #tpu.memory_space<vmem>>, vector<1x8x16xbf16>
      %81 = vector.shape_cast %80 : vector<1x8x16xbf16> to vector<8x16xbf16>
      %82 = vector.shape_cast %79 : vector<8x16xbf16> to vector<1x8x16xbf16>
      tpu.vector_store %arg9[%c1_51, %c0_52, %c0_53], %82 {strides = array<i32>} : memref<8x8x16xbf16, #tpu.memory_space<vmem>>, vector<1x8x16xbf16>,
      %83 = vector.extract_strided_slice %62 {offsets = [0, 272], sizes = [8, 16], strides = [1, 1]} : vector<8x384xbf16> to vector<8x16xbf16>
      %c1_54 = arith.constant 1 : index
      %c0_55 = arith.constant 0 : index
      %c0_56 = arith.constant 0 : index
      %84 = vector.load %arg10[%c1_54, %c0_55, %c0_56] : memref<8x8x16xbf16, #tpu.memory_space<vmem>>, vector<1x8x16xbf16>
      %85 = vector.shape_cast %84 : vector<1x8x16xbf16> to vector<8x16xbf16>
      %86 = vector.shape_cast %83 : vector<8x16xbf16> to vector<1x8x16xbf16>
      tpu.vector_store %arg10[%c1_54, %c0_55, %c0_56], %86 {strides = array<i32>} : memref<8x8x16xbf16, #tpu.memory_space<vmem>>, vector<1x8x16xbf16>,
      %87 = vector.extract_strided_slice %62 {offsets = [0, 32], sizes = [8, 16], strides = [1, 1]} : vector<8x384xbf16> to vector<8x16xbf16>
      %c2 = arith.constant 2 : index
      %c0_57 = arith.constant 0 : index
      %c0_58 = arith.constant 0 : index
      %88 = vector.load %arg8[%c2, %c0_57, %c0_58] : memref<8x8x16xbf16, #tpu.memory_space<vmem>>, vector<1x8x16xbf16>
      %89 = vector.shape_cast %88 : vector<1x8x16xbf16> to vector<8x16xbf16>
      %90 = vector.shape_cast %87 : vector<8x16xbf16> to vector<1x8x16xbf16>
      tpu.vector_store %arg8[%c2, %c0_57, %c0_58], %90 {strides = array<i32>} : memref<8x8x16xbf16, #tpu.memory_space<vmem>>, vector<1x8x16xbf16>,
      %91 = vector.extract_strided_slice %62 {offsets = [0, 160], sizes = [8, 16], strides = [1, 1]} : vector<8x384xbf16> to vector<8x16xbf16>
      %c2_59 = arith.constant 2 : index
      %c0_60 = arith.constant 0 : index
      %c0_61 = arith.constant 0 : index
      %92 = vector.load %arg9[%c2_59, %c0_60, %c0_61] : memref<8x8x16xbf16, #tpu.memory_space<vmem>>, vector<1x8x16xbf16>
      %93 = vector.shape_cast %92 : vector<1x8x16xbf16> to vector<8x16xbf16>
      %94 = vector.shape_cast %91 : vector<8x16xbf16> to vector<1x8x16xbf16>
      tpu.vector_store %arg9[%c2_59, %c0_60, %c0_61], %94 {strides = array<i32>} : memref<8x8x16xbf16, #tpu.memory_space<vmem>>, vector<1x8x16xbf16>,
      %95 = vector.extract_strided_slice %62 {offsets = [0, 288], sizes = [8, 16], strides = [1, 1]} : vector<8x384xbf16> to vector<8x16xbf16>
      %c2_62 = arith.constant 2 : index
      %c0_63 = arith.constant 0 : index
      %c0_64 = arith.constant 0 : index
      %96 = vector.load %arg10[%c2_62, %c0_63, %c0_64] : memref<8x8x16xbf16, #tpu.memory_space<vmem>>, vector<1x8x16xbf16>
      %97 = vector.shape_cast %96 : vector<1x8x16xbf16> to vector<8x16xbf16>
      %98 = vector.shape_cast %95 : vector<8x16xbf16> to vector<1x8x16xbf16>
      tpu.vector_store %arg10[%c2_62, %c0_63, %c0_64], %98 {strides = array<i32>} : memref<8x8x16xbf16, #tpu.memory_space<vmem>>, vector<1x8x16xbf16>,
      %99 = vector.extract_strided_slice %62 {offsets = [0, 48], sizes = [8, 16], strides = [1, 1]} : vector<8x384xbf16> to vector<8x16xbf16>
      %c3 = arith.constant 3 : index
      %c0_65 = arith.constant 0 : index
      %c0_66 = arith.constant 0 : index
      %100 = vector.load %arg8[%c3, %c0_65, %c0_66] : memref<8x8x16xbf16, #tpu.memory_space<vmem>>, vector<1x8x16xbf16>
      %101 = vector.shape_cast %100 : vector<1x8x16xbf16> to vector<8x16xbf16>
      %102 = vector.shape_cast %99 : vector<8x16xbf16> to vector<1x8x16xbf16>
      tpu.vector_store %arg8[%c3, %c0_65, %c0_66], %102 {strides = array<i32>} : memref<8x8x16xbf16, #tpu.memory_space<vmem>>, vector<1x8x16xbf16>,
      %103 = vector.extract_strided_slice %62 {offsets = [0, 176], sizes = [8, 16], strides = [1, 1]} : vector<8x384xbf16> to vector<8x16xbf16>
      %c3_67 = arith.constant 3 : index
      %c0_68 = arith.constant 0 : index
      %c0_69 = arith.constant 0 : index
      %104 = vector.load %arg9[%c3_67, %c0_68, %c0_69] : memref<8x8x16xbf16, #tpu.memory_space<vmem>>, vector<1x8x16xbf16>
      %105 = vector.shape_cast %104 : vector<1x8x16xbf16> to vector<8x16xbf16>
      %106 = vector.shape_cast %103 : vector<8x16xbf16> to vector<1x8x16xbf16>
      tpu.vector_store %arg9[%c3_67, %c0_68, %c0_69], %106 {strides = array<i32>} : memref<8x8x16xbf16, #tpu.memory_space<vmem>>, vector<1x8x16xbf16>,
      %107 = vector.extract_strided_slice %62 {offsets = [0, 304], sizes = [8, 16], strides = [1, 1]} : vector<8x384xbf16> to vector<8x16xbf16>
      %c3_70 = arith.constant 3 : index
      %c0_71 = arith.constant 0 : index
      %c0_72 = arith.constant 0 : index
      %108 = vector.load %arg10[%c3_70, %c0_71, %c0_72] : memref<8x8x16xbf16, #tpu.memory_space<vmem>>, vector<1x8x16xbf16>
      %109 = vector.shape_cast %108 : vector<1x8x16xbf16> to vector<8x16xbf16>
      %110 = vector.shape_cast %107 : vector<8x16xbf16> to vector<1x8x16xbf16>
      tpu.vector_store %arg10[%c3_70, %c0_71, %c0_72], %110 {strides = array<i32>} : memref<8x8x16xbf16, #tpu.memory_space<vmem>>, vector<1x8x16xbf16>,
      %111 = vector.extract_strided_slice %62 {offsets = [0, 64], sizes = [8, 16], strides = [1, 1]} : vector<8x384xbf16> to vector<8x16xbf16>
      %c4 = arith.constant 4 : index
      %c0_73 = arith.constant 0 : index
      %c0_74 = arith.constant 0 : index
      %112 = vector.load %arg8[%c4, %c0_73, %c0_74] : memref<8x8x16xbf16, #tpu.memory_space<vmem>>, vector<1x8x16xbf16>
      %113 = vector.shape_cast %112 : vector<1x8x16xbf16> to vector<8x16xbf16>
      %114 = vector.shape_cast %111 : vector<8x16xbf16> to vector<1x8x16xbf16>
      tpu.vector_store %arg8[%c4, %c0_73, %c0_74], %114 {strides = array<i32>} : memref<8x8x16xbf16, #tpu.memory_space<vmem>>, vector<1x8x16xbf16>,
      %115 = vector.extract_strided_slice %62 {offsets = [0, 192], sizes = [8, 16], strides = [1, 1]} : vector<8x384xbf16> to vector<8x16xbf16>
      %c4_75 = arith.constant 4 : index
      %c0_76 = arith.constant 0 : index
      %c0_77 = arith.constant 0 : index
      %116 = vector.load %arg9[%c4_75, %c0_76, %c0_77] : memref<8x8x16xbf16, #tpu.memory_space<vmem>>, vector<1x8x16xbf16>
      %117 = vector.shape_cast %116 : vector<1x8x16xbf16> to vector<8x16xbf16>
      %118 = vector.shape_cast %115 : vector<8x16xbf16> to vector<1x8x16xbf16>
      tpu.vector_store %arg9[%c4_75, %c0_76, %c0_77], %118 {strides = array<i32>} : memref<8x8x16xbf16, #tpu.memory_space<vmem>>, vector<1x8x16xbf16>,
      %119 = vector.extract_strided_slice %62 {offsets = [0, 320], sizes = [8, 16], strides = [1, 1]} : vector<8x384xbf16> to vector<8x16xbf16>
      %c4_78 = arith.constant 4 : index
      %c0_79 = arith.constant 0 : index
      %c0_80 = arith.constant 0 : index
      %120 = vector.load %arg10[%c4_78, %c0_79, %c0_80] : memref<8x8x16xbf16, #tpu.memory_space<vmem>>, vector<1x8x16xbf16>
      %121 = vector.shape_cast %120 : vector<1x8x16xbf16> to vector<8x16xbf16>
      %122 = vector.shape_cast %119 : vector<8x16xbf16> to vector<1x8x16xbf16>
      tpu.vector_store %arg10[%c4_78, %c0_79, %c0_80], %122 {strides = array<i32>} : memref<8x8x16xbf16, #tpu.memory_space<vmem>>, vector<1x8x16xbf16>,
      %123 = vector.extract_strided_slice %62 {offsets = [0, 80], sizes = [8, 16], strides = [1, 1]} : vector<8x384xbf16> to vector<8x16xbf16>
      %c5 = arith.constant 5 : index
      %c0_81 = arith.constant 0 : index
      %c0_82 = arith.constant 0 : index
      %124 = vector.load %arg8[%c5, %c0_81, %c0_82] : memref<8x8x16xbf16, #tpu.memory_space<vmem>>, vector<1x8x16xbf16>
      %125 = vector.shape_cast %124 : vector<1x8x16xbf16> to vector<8x16xbf16>
      %126 = vector.shape_cast %123 : vector<8x16xbf16> to vector<1x8x16xbf16>
      tpu.vector_store %arg8[%c5, %c0_81, %c0_82], %126 {strides = array<i32>} : memref<8x8x16xbf16, #tpu.memory_space<vmem>>, vector<1x8x16xbf16>,
      %127 = vector.extract_strided_slice %62 {offsets = [0, 208], sizes = [8, 16], strides = [1, 1]} : vector<8x384xbf16> to vector<8x16xbf16>
      %c5_83 = arith.constant 5 : index
      %c0_84 = arith.constant 0 : index
      %c0_85 = arith.constant 0 : index
      %128 = vector.load %arg9[%c5_83, %c0_84, %c0_85] : memref<8x8x16xbf16, #tpu.memory_space<vmem>>, vector<1x8x16xbf16>
      %129 = vector.shape_cast %128 : vector<1x8x16xbf16> to vector<8x16xbf16>
      %130 = vector.shape_cast %127 : vector<8x16xbf16> to vector<1x8x16xbf16>
      tpu.vector_store %arg9[%c5_83, %c0_84, %c0_85], %130 {strides = array<i32>} : memref<8x8x16xbf16, #tpu.memory_space<vmem>>, vector<1x8x16xbf16>,
      %131 = vector.extract_strided_slice %62 {offsets = [0, 336], sizes = [8, 16], strides = [1, 1]} : vector<8x384xbf16> to vector<8x16xbf16>
      %c5_86 = arith.constant 5 : index
      %c0_87 = arith.constant 0 : index
      %c0_88 = arith.constant 0 : index
      %132 = vector.load %arg10[%c5_86, %c0_87, %c0_88] : memref<8x8x16xbf16, #tpu.memory_space<vmem>>, vector<1x8x16xbf16>
      %133 = vector.shape_cast %132 : vector<1x8x16xbf16> to vector<8x16xbf16>
      %134 = vector.shape_cast %131 : vector<8x16xbf16> to vector<1x8x16xbf16>
      tpu.vector_store %arg10[%c5_86, %c0_87, %c0_88], %134 {strides = array<i32>} : memref<8x8x16xbf16, #tpu.memory_space<vmem>>, vector<1x8x16xbf16>,
      %135 = vector.extract_strided_slice %62 {offsets = [0, 96], sizes = [8, 16], strides = [1, 1]} : vector<8x384xbf16> to vector<8x16xbf16>
      %c6 = arith.constant 6 : index
      %c0_89 = arith.constant 0 : index
      %c0_90 = arith.constant 0 : index
      %136 = vector.load %arg8[%c6, %c0_89, %c0_90] : memref<8x8x16xbf16, #tpu.memory_space<vmem>>, vector<1x8x16xbf16>
      %137 = vector.shape_cast %136 : vector<1x8x16xbf16> to vector<8x16xbf16>
      %138 = vector.shape_cast %135 : vector<8x16xbf16> to vector<1x8x16xbf16>
      tpu.vector_store %arg8[%c6, %c0_89, %c0_90], %138 {strides = array<i32>} : memref<8x8x16xbf16, #tpu.memory_space<vmem>>, vector<1x8x16xbf16>,
      %139 = vector.extract_strided_slice %62 {offsets = [0, 224], sizes = [8, 16], strides = [1, 1]} : vector<8x384xbf16> to vector<8x16xbf16>
      %c6_91 = arith.constant 6 : index
      %c0_92 = arith.constant 0 : index
      %c0_93 = arith.constant 0 : index
      %140 = vector.load %arg9[%c6_91, %c0_92, %c0_93] : memref<8x8x16xbf16, #tpu.memory_space<vmem>>, vector<1x8x16xbf16>
      %141 = vector.shape_cast %140 : vector<1x8x16xbf16> to vector<8x16xbf16>
      %142 = vector.shape_cast %139 : vector<8x16xbf16> to vector<1x8x16xbf16>
      tpu.vector_store %arg9[%c6_91, %c0_92, %c0_93], %142 {strides = array<i32>} : memref<8x8x16xbf16, #tpu.memory_space<vmem>>, vector<1x8x16xbf16>,
      %143 = vector.extract_strided_slice %62 {offsets = [0, 352], sizes = [8, 16], strides = [1, 1]} : vector<8x384xbf16> to vector<8x16xbf16>
      %c6_94 = arith.constant 6 : index
      %c0_95 = arith.constant 0 : index
      %c0_96 = arith.constant 0 : index
      %144 = vector.load %arg10[%c6_94, %c0_95, %c0_96] : memref<8x8x16xbf16, #tpu.memory_space<vmem>>, vector<1x8x16xbf16>
      %145 = vector.shape_cast %144 : vector<1x8x16xbf16> to vector<8x16xbf16>
      %146 = vector.shape_cast %143 : vector<8x16xbf16> to vector<1x8x16xbf16>
      tpu.vector_store %arg10[%c6_94, %c0_95, %c0_96], %146 {strides = array<i32>} : memref<8x8x16xbf16, #tpu.memory_space<vmem>>, vector<1x8x16xbf16>,
      %147 = vector.extract_strided_slice %62 {offsets = [0, 112], sizes = [8, 16], strides = [1, 1]} : vector<8x384xbf16> to vector<8x16xbf16>
      %c7 = arith.constant 7 : index
      %c0_97 = arith.constant 0 : index
      %c0_98 = arith.constant 0 : index
      %148 = vector.load %arg8[%c7, %c0_97, %c0_98] : memref<8x8x16xbf16, #tpu.memory_space<vmem>>, vector<1x8x16xbf16>
      %149 = vector.shape_cast %148 : vector<1x8x16xbf16> to vector<8x16xbf16>
      %150 = vector.shape_cast %147 : vector<8x16xbf16> to vector<1x8x16xbf16>
      tpu.vector_store %arg8[%c7, %c0_97, %c0_98], %150 {strides = array<i32>} : memref<8x8x16xbf16, #tpu.memory_space<vmem>>, vector<1x8x16xbf16>,
      %151 = vector.extract_strided_slice %62 {offsets = [0, 240], sizes = [8, 16], strides = [1, 1]} : vector<8x384xbf16> to vector<8x16xbf16>
      %c7_99 = arith.constant 7 : index
      %c0_100 = arith.constant 0 : index
      %c0_101 = arith.constant 0 : index
      %152 = vector.load %arg9[%c7_99, %c0_100, %c0_101] : memref<8x8x16xbf16, #tpu.memory_space<vmem>>, vector<1x8x16xbf16>
      %153 = vector.shape_cast %152 : vector<1x8x16xbf16> to vector<8x16xbf16>
      %154 = vector.shape_cast %151 : vector<8x16xbf16> to vector<1x8x16xbf16>
      tpu.vector_store %arg9[%c7_99, %c0_100, %c0_101], %154 {strides = array<i32>} : memref<8x8x16xbf16, #tpu.memory_space<vmem>>, vector<1x8x16xbf16>,
      %155 = vector.extract_strided_slice %62 {offsets = [0, 368], sizes = [8, 16], strides = [1, 1]} : vector<8x384xbf16> to vector<8x16xbf16>
      %c7_102 = arith.constant 7 : index
      %c0_103 = arith.constant 0 : index
      %c0_104 = arith.constant 0 : index
      %156 = vector.load %arg10[%c7_102, %c0_103, %c0_104] : memref<8x8x16xbf16, #tpu.memory_space<vmem>>, vector<1x8x16xbf16>
      %157 = vector.shape_cast %156 : vector<1x8x16xbf16> to vector<8x16xbf16>
      %158 = vector.shape_cast %155 : vector<8x16xbf16> to vector<1x8x16xbf16>
      tpu.vector_store %arg10[%c7_102, %c0_103, %c0_104], %158 {strides = array<i32>} : memref<8x8x16xbf16, #tpu.memory_space<vmem>>, vector<1x8x16xbf16>,
    } else {
    }
    %c0 = arith.constant 0 : index
    %c0_1 = arith.constant 0 : index
    %c0_2 = arith.constant 0 : index
    %3 = vector.load %arg8[%c0, %c0_1, %c0_2] : memref<8x8x16xbf16, #tpu.memory_space<vmem>>, vector<8x8x16xbf16>
    %c0_3 = arith.constant 0 : index
    %c0_4 = arith.constant 0 : index
    %c0_5 = arith.constant 0 : index
    %4 = vector.load %arg9[%c0_3, %c0_4, %c0_5] : memref<8x8x16xbf16, #tpu.memory_space<vmem>>, vector<8x8x16xbf16>
    %c0_6 = arith.constant 0 : index
    %c0_7 = arith.constant 0 : index
    %c0_8 = arith.constant 0 : index
    %5 = vector.load %arg10[%c0_6, %c0_7, %c0_8] : memref<8x8x16xbf16, #tpu.memory_space<vmem>>, vector<8x8x16xbf16>
    "tpu.trace_start"() <{level = 10 : i32, message = "hqd,hkd->hqk"}> : () -> ()
    %cst = arith.constant dense<0.000000e+00> : vector<8x8x8xf32>
    %6 = tpu.matmul %3, %4, %cst {dimension_numbers = #tpu.dot_dimension_numbers<[2], [2], [1], [1], [0, 0, 0, 1, 1, 1], [0], [0]>} : vector<8x8x16xbf16>, vector<8x8x16xbf16>, vector<8x8x8xf32> -> vector<8x8x8xf32>
    "tpu.trace_stop"() : () -> ()
    %cst_9 = arith.constant dense<0xFF800000> : vector<8x8xf32>
    %7 = vector.multi_reduction <maximumf>, %6, %cst_9 [2] : vector<8x8x8xf32> to vector<8x8xf32>
    %8 = vector.shape_cast %7 : vector<8x8xf32> to vector<8x8x1xf32>
    %9 = vector.broadcast %8 : vector<8x8x1xf32> to vector<8x8x8xf32>
    %10 = arith.subf %6, %9 : vector<8x8x8xf32>
    %11 = math.exp %10 : vector<8x8x8xf32>
    %cst_10 = arith.constant dense<0.000000e+00> : vector<8x8xf32>
    %12 = vector.multi_reduction <add>, %11, %cst_10 [2] : vector<8x8x8xf32> to vector<8x8xf32>
    %13 = vector.shape_cast %12 : vector<8x8xf32> to vector<8x8x1xf32>
    %14 = arith.truncf %11 : vector<8x8x8xf32> to vector<8x8x8xbf16>
    "tpu.trace_start"() <{level = 10 : i32, message = "hqk,hkd->hqd"}> : () -> ()
    %cst_11 = arith.constant dense<0.000000e+00> : vector<8x8x16xf32>
    %15 = tpu.matmul %14, %5, %cst_11 {dimension_numbers = #tpu.dot_dimension_numbers<[2], [1], [1], [2], [0, 0, 0, 1, 1, 2], [0], [0]>} : vector<8x8x8xbf16>, vector<8x8x16xbf16>, vector<8x8x16xf32> -> vector<8x8x16xf32>
    "tpu.trace_stop"() : () -> ()
    %16 = tpu.reciprocal %13 {approx = true} : vector<8x8x1xf32> -> vector<8x8x1xf32>
    %cst_12 = arith.constant 0.0883883461 : f32
    %17 = vector.broadcast %cst_12 : f32 to vector<8x8x1xf32>
    %18 = arith.mulf %16, %17 : vector<8x8x1xf32>
    %19 = vector.broadcast %18 : vector<8x8x1xf32> to vector<8x8x16xf32>
    %20 = arith.mulf %15, %19 : vector<8x8x16xf32>
    %21 = arith.truncf %20 : vector<8x8x16xf32> to vector<8x8x16xbf16>
    %22 = vector.extract_strided_slice %21 {offsets = [0, 0, 0], sizes = [1, 8, 16], strides = [1, 1, 1]} : vector<8x8x16xbf16> to vector<1x8x16xbf16>
    %23 = vector.shape_cast %22 : vector<1x8x16xbf16> to vector<8x16xbf16>
    %c0_13 = arith.constant 0 : index
    %c0_14 = arith.constant 0 : index
    %24 = vector.load %arg11[%c0_13, %c0_14] : memref<8x128xbf16, #tpu.memory_space<vmem>>, vector<8x16xbf16>
    tpu.vector_store %arg11[%c0_13, %c0_14], %23 {strides = array<i32>} : memref<8x128xbf16, #tpu.memory_space<vmem>>, vector<8x16xbf16>,
    %25 = vector.extract_strided_slice %21 {offsets = [1, 0, 0], sizes = [1, 8, 16], strides = [1, 1, 1]} : vector<8x8x16xbf16> to vector<1x8x16xbf16>
    %26 = vector.shape_cast %25 : vector<1x8x16xbf16> to vector<8x16xbf16>
    %c0_15 = arith.constant 0 : index
    %c16 = arith.constant 16 : index
    %27 = vector.load %arg11[%c0_15, %c16] : memref<8x128xbf16, #tpu.memory_space<vmem>>, vector<8x16xbf16>
    tpu.vector_store %arg11[%c0_15, %c16], %26 {strides = array<i32>} : memref<8x128xbf16, #tpu.memory_space<vmem>>, vector<8x16xbf16>,
    %28 = vector.extract_strided_slice %21 {offsets = [2, 0, 0], sizes = [1, 8, 16], strides = [1, 1, 1]} : vector<8x8x16xbf16> to vector<1x8x16xbf16>
    %29 = vector.shape_cast %28 : vector<1x8x16xbf16> to vector<8x16xbf16>
    %c0_16 = arith.constant 0 : index
    %c32 = arith.constant 32 : index
    %30 = vector.load %arg11[%c0_16, %c32] : memref<8x128xbf16, #tpu.memory_space<vmem>>, vector<8x16xbf16>
    tpu.vector_store %arg11[%c0_16, %c32], %29 {strides = array<i32>} : memref<8x128xbf16, #tpu.memory_space<vmem>>, vector<8x16xbf16>,
    %31 = vector.extract_strided_slice %21 {offsets = [3, 0, 0], sizes = [1, 8, 16], strides = [1, 1, 1]} : vector<8x8x16xbf16> to vector<1x8x16xbf16>
    %32 = vector.shape_cast %31 : vector<1x8x16xbf16> to vector<8x16xbf16>
    %c0_17 = arith.constant 0 : index
    %c48 = arith.constant 48 : index
    %33 = vector.load %arg11[%c0_17, %c48] : memref<8x128xbf16, #tpu.memory_space<vmem>>, vector<8x16xbf16>
    tpu.vector_store %arg11[%c0_17, %c48], %32 {strides = array<i32>} : memref<8x128xbf16, #tpu.memory_space<vmem>>, vector<8x16xbf16>,
    %34 = vector.extract_strided_slice %21 {offsets = [4, 0, 0], sizes = [1, 8, 16], strides = [1, 1, 1]} : vector<8x8x16xbf16> to vector<1x8x16xbf16>
    %35 = vector.shape_cast %34 : vector<1x8x16xbf16> to vector<8x16xbf16>
    %c0_18 = arith.constant 0 : index
    %c64 = arith.constant 64 : index
    %36 = vector.load %arg11[%c0_18, %c64] : memref<8x128xbf16, #tpu.memory_space<vmem>>, vector<8x16xbf16>
    tpu.vector_store %arg11[%c0_18, %c64], %35 {strides = array<i32>} : memref<8x128xbf16, #tpu.memory_space<vmem>>, vector<8x16xbf16>,
    %37 = vector.extract_strided_slice %21 {offsets = [5, 0, 0], sizes = [1, 8, 16], strides = [1, 1, 1]} : vector<8x8x16xbf16> to vector<1x8x16xbf16>
    %38 = vector.shape_cast %37 : vector<1x8x16xbf16> to vector<8x16xbf16>
    %c0_19 = arith.constant 0 : index
    %c80 = arith.constant 80 : index
    %39 = vector.load %arg11[%c0_19, %c80] : memref<8x128xbf16, #tpu.memory_space<vmem>>, vector<8x16xbf16>
    tpu.vector_store %arg11[%c0_19, %c80], %38 {strides = array<i32>} : memref<8x128xbf16, #tpu.memory_space<vmem>>, vector<8x16xbf16>,
    %40 = vector.extract_strided_slice %21 {offsets = [6, 0, 0], sizes = [1, 8, 16], strides = [1, 1, 1]} : vector<8x8x16xbf16> to vector<1x8x16xbf16>
    %41 = vector.shape_cast %40 : vector<1x8x16xbf16> to vector<8x16xbf16>
    %c0_20 = arith.constant 0 : index
    %c96 = arith.constant 96 : index
    %42 = vector.load %arg11[%c0_20, %c96] : memref<8x128xbf16, #tpu.memory_space<vmem>>, vector<8x16xbf16>
    tpu.vector_store %arg11[%c0_20, %c96], %41 {strides = array<i32>} : memref<8x128xbf16, #tpu.memory_space<vmem>>, vector<8x16xbf16>,
    %43 = vector.extract_strided_slice %21 {offsets = [7, 0, 0], sizes = [1, 8, 16], strides = [1, 1, 1]} : vector<8x8x16xbf16> to vector<1x8x16xbf16>
    %44 = vector.shape_cast %43 : vector<1x8x16xbf16> to vector<8x16xbf16>
    %c0_21 = arith.constant 0 : index
    %c112 = arith.constant 112 : index
    %45 = vector.load %arg11[%c0_21, %c112] : memref<8x128xbf16, #tpu.memory_space<vmem>>, vector<8x16xbf16>
    tpu.vector_store %arg11[%c0_21, %c112], %44 {strides = array<i32>} : memref<8x128xbf16, #tpu.memory_space<vmem>>, vector<8x16xbf16>,
    %c0_22 = arith.constant 0 : index
    %c0_23 = arith.constant 0 : index
    %46 = vector.load %arg11[%c0_22, %c0_23] : memref<8x128xbf16, #tpu.memory_space<vmem>>, vector<8x128xbf16>
    %c0_24 = arith.constant 0 : index
    %c0_25 = arith.constant 0 : index
    %47 = vector.load %arg5[%c0_24, %c0_25] : memref<128x128xbf16, #tpu.memory_space<vmem>>, vector<128x128xbf16>
    %cst_26 = arith.constant dense<0.000000e+00> : vector<8x128xf32>
    %48 = tpu.matmul %46, %47, %cst_26 {dimension_numbers = #tpu.dot_dimension_numbers<[1], [0], [0], [1], [0, 0, 1, 1], [], []>} : vector<8x128xbf16>, vector<128x128xbf16>, vector<8x128xf32> -> vector<8x128xf32>
    %c0_27 = arith.constant 0 : index
    %c0_28 = arith.constant 0 : index
    %49 = vector.load %arg6[%c0_27, %c0_28] : memref<1x128xf32, #tpu.memory_space<vmem>>, vector<1x128xf32>
    %50 = vector.broadcast %49 : vector<1x128xf32> to vector<8x128xf32>
    %51 = arith.addf %48, %50 : vector<8x128xf32>
    %c0_29 = arith.constant 0 : index
    %c0_30 = arith.constant 0 : index
    %c0_31 = arith.constant 0 : index
    %52 = vector.load %arg7[%c0_29, %c0_30, %c0_31] : memref<1x8x128xf32, #tpu.memory_space<vmem>>, vector<1x8x128xf32>
    %53 = vector.shape_cast %52 : vector<1x8x128xf32> to vector<8x128xf32>
    %54 = vector.shape_cast %51 : vector<8x128xf32> to vector<1x8x128xf32>
    tpu.vector_store %arg7[%c0_29, %c0_30, %c0_31], %54 {strides = array<i32>} : memref<1x8x128xf32, #tpu.memory_space<vmem>>, vector<1x8x128xf32>,
    return
  }
  func.func @transform_0(%arg0: i32, %arg1: i32) -> (i32, i32, i32) {
    %c0_i32 = arith.constant 0 : i32
    %c0_i32_0 = arith.constant 0 : i32
    %c0_i32_1 = arith.constant 0 : i32
    return %arg0, %c0_i32, %c0_i32_0 : i32, i32, i32
  }
  func.func @transform_1(%arg0: i32, %arg1: i32) -> (i32, i32) {
    %c0_i32 = arith.constant 0 : i32
    %c0_i32_0 = arith.constant 0 : i32
    %c0_i32_1 = arith.constant 0 : i32
    return %c0_i32, %c0_i32_0 : i32, i32
  }
  func.func @transform_2(%arg0: i32, %arg1: i32) -> (i32, i32) {
    %c0_i32 = arith.constant 0 : i32
    %c0_i32_0 = arith.constant 0 : i32
    %c0_i32_1 = arith.constant 0 : i32
    return %c0_i32, %c0_i32_0 : i32, i32
  }
  func.func @transform_3(%arg0: i32, %arg1: i32) -> (i32, i32) {
    %c0_i32 = arith.constant 0 : i32
    %c0_i32_0 = arith.constant 0 : i32
    %c0_i32_1 = arith.constant 0 : i32
    return %c0_i32, %c0_i32_0 : i32, i32
  }
  func.func @transform_4(%arg0: i32, %arg1: i32) -> (i32, i32) {
    %c0_i32 = arith.constant 0 : i32
    %c0_i32_0 = arith.constant 0 : i32
    %c0_i32_1 = arith.constant 0 : i32
    return %c0_i32, %c0_i32_0 : i32, i32
  }
  func.func @transform_5(%arg0: i32, %arg1: i32) -> (i32, i32, i32) {
    %c0_i32 = arith.constant 0 : i32
    %c0_i32_0 = arith.constant 0 : i32
    return %arg0, %arg1, %c0_i32 : i32, i32, i32
  }
}

</mosaic_0001>

<llo_original>
// kernel: tpu_custom_call.1
$region0: #{tpu_custom_call.1}
  #allocation0 [shape = 'u32[]', space=smem, size = 0x4, offset = 0x4, fixed_abs, tag = 'smem constant byte address 0x4 - core index']
  #allocation1 [shape = 'u32[144,128]{1,0:T(1,128)}', space=vmem, size = 0x12000, scoped, tag = 'internal scratch']
  #allocation2 [shape = 'bf16[8,8,16]{2,1,0:T(8,128)(2,1)}', space=vmem, size = 0x4000, scoped, tag = 'scratch operand']
  #allocation3 [shape = 'bf16[8,8,16]{2,1,0:T(8,128)(2,1)}', space=vmem, size = 0x4000, scoped, tag = 'scratch operand']
  #allocation4 [shape = 'bf16[8,8,16]{2,1,0:T(8,128)(2,1)}', space=vmem, size = 0x4000, scoped, tag = 'scratch operand']
  #allocation5 [shape = 'bf16[8,128]{1,0:T(8,128)(2,1)}', space=vmem, size = 0x800, scoped, tag = 'scratch operand']
  %s0 = inlined_call_operand.hbm [shape: bf16[2,8,128], index: 0, kind: input, shape index: {}]
  %s1 = inlined_call_operand.hbm [shape: bf16[128,384], index: 1, kind: input, shape index: {}]
  %s2 = inlined_call_operand.vmem [shape: f32[1,384], index: 2, kind: input, shape index: {}]
  %s3 = inlined_call_operand.hbm [shape: bf16[128,128], index: 3, kind: input, shape index: {}]
  %s4 = inlined_call_operand.vmem [shape: f32[1,128], index: 4, kind: input, shape index: {}]
  %s5 = inlined_call_operand.hbm [shape: f32[2,8,128], index: 5, kind: output, shape index: {}]
  %s6 = sld [smem:[#allocation0]]
  $region69: #{tpu_custom_call.1} parent=0
    _
  %s8 = ssub.s32 1, %s6
  %s9 = scalar_select 0, %s8, %s6
  $region1: #{tpu_custom_call.1} parent=0
    #allocation6 [shape = 'u8[4096]{0}', space=vmem, size = 0x1000, scoped, tag = 'input window, operand 0']
    #allocation7 [shape = 's32[2]{0}', space=sflag, size = 0x8, scoped, tag = 'scoped memory for tpu_custom_call.1']
    #allocation8 [shape = 's32[2]{0}', space=sflag, size = 0x8, scoped, tag = 'scoped memory for tpu_custom_call.1']
    #allocation9 [shape = 'u8[98304]{0}', space=vmem, size = 0x18000, scoped, tag = 'input window, operand 1, single buffered']
    #allocation10 [shape = 's32[1]{0}', space=sflag, size = 0x4, scoped, tag = 'scoped memory for tpu_custom_call.1']
    #allocation11 [shape = 'u8[32768]{0}', space=vmem, size = 0x8000, scoped, tag = 'input window, operand 3, single buffered']
    #allocation12 [shape = 'u8[8192]{0}', space=vmem, size = 0x2000, scoped, tag = 'output window, operand 0']
    %10 = vsyncpa [#allocation7], 0
    %s11 = scalar_lea.sflag [#allocation7], 1
    %12 = vsyncpa %s11, 0
    %13 = vsyncpa [#allocation10], 0
    %14 = vsyncpa [#allocation8], 0
    %s15 = scalar_lea.sflag [#allocation8], 1
    %16 = vsyncpa %s15, 0
    loop: start=0, step=1, limit=4
    $region2: #{tpu_custom_call.1} parent=1 // loop_pre_header
      _
    $region3: #{tpu_custom_call.1} parent=1 // loop_header
      %s18 = sphi 0, %s22
      %p19 = scmp.ge.s32.totalorder %s18, 4
      %s25 = sphi 0, %s37
      %s26 = sphi 0, %s33
      %s27 = sphi 0, %s25
      %s28 = sphi 0, %s26
      %s29 = sphi 0, %s27
      %s30 = sphi 0, %s28
      %s40 = sphi 0, %s42
      %s43 = sphi 0, %s40
      %s44 = sphi 0, %s43
      %s60 = sphi 0, %s44
      %s64 = sphi 0, %s64
      %s66 = sphi 0, %s64
      %s67 = sphi 0, %s66
      %s81 = sphi 0, %s67
      %s85 = sphi 0, %s85
      %s87 = sphi 0, %s85
      %s88 = sphi 0, %s87
      %s102 = sphi 0, %s88
      %s106 = sphi 0, %s106
      %s108 = sphi 0, %s106
      %s109 = sphi 0, %s108
      %s123 = sphi 0, %s109
      %s127 = sphi 0, %s127
      %s129 = sphi 0, %s127
      %s130 = sphi 0, %s129
      %s144 = sphi 0, %s130
      %s152 = sphi 0, %s154
      %s155 = sphi 0, %s152
      %s156 = sphi 0, %s155
      %s172 = sphi 0, %s156
    $region4: #{tpu_custom_call.1} parent=1 // loop_header_branch
      %21 = sbr.rel (%p19) target = $region8
    $region5: #{tpu_custom_call.1} parent=1 // loop_body
      %s23 = ssub.s32 %s18, 1
      %s24 = ssub.s32 %s18, 2
      %s31 = sadd.s32 1, %s26
      %p32 = scmp.ge.s32.totalorder %s31, 1
      %s33 = scalar_select %p32, 0, %s31
      %s34 = sadd.s32 1, %s25
      %s35 = scalar_select %p32, %s34, %s25
      %p36 = scmp.ge.s32.totalorder %s35, 2
      %s37 = scalar_select %p36, 0, %s35
      %s38 = ssub.s32 %s25, %s37
      %p39 = scmp.eq.s32.totalorder %s38, 0
      %s41 = sadd.s32 %s40, 1
      %s42 = scalar_select %p39, %s40, %s41
      %p45 = pneg %p39
      %p46 = scmp.eq.s32.totalorder %s18, 1
      %p47 = por %p45, %p46
      %p48 = scmp.ne.s32.totalorder %s40, %s43
      %p49 = scmp.eq.s32.totalorder %s18, 0
      %p50 = por %p48, %p49
      %p51 = scmp.ne.s32.totalorder %s40, %s43
      %p52 = scmp.eq.s32.totalorder %s23, 1
      %p53 = por %p51, %p52
      %p54 = scmp.ne.s32.totalorder %s43, %s44
      %p55 = scmp.eq.s32.totalorder %s23, 0
      %p56 = por %p54, %p55
      %p57 = scmp.ne.s32.totalorder %s43, %s44
      %p58 = scmp.eq.s32.totalorder %s24, 1
      %p59 = por %p57, %p58
      %p61 = scmp.ne.s32.totalorder %s44, %s60
      %p62 = scmp.eq.s32.totalorder %s24, 0
      %p63 = por %p61, %p62
      %s65 = sadd.s32 %s64, 1
      %p68 = scmp.eq.s32.totalorder %s18, 1
      %p69 = scmp.ne.s32.totalorder %s64, %s66
      %p70 = scmp.eq.s32.totalorder %s18, 0
      %p71 = por %p69, %p70
      %p72 = scmp.ne.s32.totalorder %s64, %s66
      %p73 = scmp.eq.s32.totalorder %s23, 1
      %p74 = por %p72, %p73
      %p75 = scmp.ne.s32.totalorder %s66, %s67
      %p76 = scmp.eq.s32.totalorder %s23, 0
      %p77 = por %p75, %p76
      %p78 = scmp.ne.s32.totalorder %s66, %s67
      %p79 = scmp.eq.s32.totalorder %s24, 1
      %p80 = por %p78, %p79
      %p82 = scmp.ne.s32.totalorder %s67, %s81
      %p83 = scmp.eq.s32.totalorder %s24, 0
      %p84 = por %p82, %p83
      %s86 = sadd.s32 %s85, 1
      %p89 = scmp.eq.s32.totalorder %s18, 1
      %p90 = scmp.ne.s32.totalorder %s85, %s87
      %p91 = scmp.eq.s32.totalorder %s18, 0
      %p92 = por %p90, %p91
      %p93 = scmp.ne.s32.totalorder %s85, %s87
      %p94 = scmp.eq.s32.totalorder %s23, 1
      %p95 = por %p93, %p94
      %p96 = scmp.ne.s32.totalorder %s87, %s88
      %p97 = scmp.eq.s32.totalorder %s23, 0
      %p98 = por %p96, %p97
      %p99 = scmp.ne.s32.totalorder %s87, %s88
      %p100 = scmp.eq.s32.totalorder %s24, 1
      %p101 = por %p99, %p100
      %p103 = scmp.ne.s32.totalorder %s88, %s102
      %p104 = scmp.eq.s32.totalorder %s24, 0
      %p105 = por %p103, %p104
      %s107 = sadd.s32 %s106, 1
      %p110 = scmp.eq.s32.totalorder %s18, 1
      %p111 = scmp.ne.s32.totalorder %s106, %s108
      %p112 = scmp.eq.s32.totalorder %s18, 0
      %p113 = por %p111, %p112
      %p114 = scmp.ne.s32.totalorder %s106, %s108
      %p115 = scmp.eq.s32.totalorder %s23, 1
      %p116 = por %p114, %p115
      %p117 = scmp.ne.s32.totalorder %s108, %s109
      %p118 = scmp.eq.s32.totalorder %s23, 0
      %p119 = por %p117, %p118
      %p120 = scmp.ne.s32.totalorder %s108, %s109
      %p121 = scmp.eq.s32.totalorder %s24, 1
      %p122 = por %p120, %p121
      %p124 = scmp.ne.s32.totalorder %s109, %s123
      %p125 = scmp.eq.s32.totalorder %s24, 0
      %p126 = por %p124, %p125
      %s128 = sadd.s32 %s127, 1
      %p131 = scmp.eq.s32.totalorder %s18, 1
      %p132 = scmp.ne.s32.totalorder %s127, %s129
      %p133 = scmp.eq.s32.totalorder %s18, 0
      %p134 = por %p132, %p133
      %p135 = scmp.ne.s32.totalorder %s127, %s129
      %p136 = scmp.eq.s32.totalorder %s23, 1
      %p137 = por %p135, %p136
      %p138 = scmp.ne.s32.totalorder %s129, %s130
      %p139 = scmp.eq.s32.totalorder %s23, 0
      %p140 = por %p138, %p139
      %p141 = scmp.ne.s32.totalorder %s129, %s130
      %p142 = scmp.eq.s32.totalorder %s24, 1
      %p143 = por %p141, %p142
      %p145 = scmp.ne.s32.totalorder %s130, %s144
      %p146 = scmp.eq.s32.totalorder %s24, 0
      %p147 = por %p145, %p146
      %s148 = ssub.s32 %s25, %s37
      %s149 = ssub.s32 %s26, %s33
      %s150 = sor.u32 %s148, %s149
      %p151 = scmp.eq.s32.totalorder %s150, 0
      %s153 = sadd.s32 %s152, 1
      %s154 = scalar_select %p151, %s152, %s153
      %p157 = pneg %p151
      %p158 = scmp.eq.s32.totalorder %s18, 1
      %p159 = por %p157, %p158
      %p160 = scmp.ne.s32.totalorder %s152, %s155
      %p161 = scmp.eq.s32.totalorder %s18, 0
      %p162 = por %p160, %p161
      %p163 = scmp.ne.s32.totalorder %s152, %s155
      %p164 = scmp.eq.s32.totalorder %s23, 1
      %p165 = por %p163, %p164
      %p166 = scmp.ne.s32.totalorder %s155, %s156
      %p167 = scmp.eq.s32.totalorder %s23, 0
      %p168 = por %p166, %p167
      %p169 = scmp.ne.s32.totalorder %s155, %s156
      %p170 = scmp.eq.s32.totalorder %s24, 1
      %p171 = por %p169, %p170
      %p173 = scmp.ne.s32.totalorder %s156, %s172
      %p174 = scmp.eq.s32.totalorder %s24, 0
      %p175 = por %p173, %p174
      %p176 = scmp.le.s32.totalorder 1, %s18
      %p177 = scmp.lt.s32.totalorder %s18, 3
      %p178 = pnand %p176, %p177
      %p179 = pneg %p178
      // Predicated region
      $region9: #{tpu_custom_call.1} parent=5 // pred_check
        _
      $region10: #{tpu_custom_call.1} parent=5 // pred_check_branch
        %181 = sbr.rel (%p178) target = $region12
      $region11: #{tpu_custom_call.1} parent=5 // pred_region
        %s182 = ssub.s32 %s18, 1
        // Predicated region
        $region13: #{tpu_custom_call.1} parent=11 // pred_check
          %p183 = pneg %p77
        $region14: #{tpu_custom_call.1} parent=11 // pred_check_branch
          %185 = sbr.rel (%p183) target = $region16
        $region15: #{tpu_custom_call.1} parent=11 // pred_region
          %s187 = ssub.s32 3072, 3072
          %188 = vsyncadd [#allocation10], %s187
          %s189 = sshll.u32 [#allocation9], 4
          %s190 = int_to_ptr.vmem [resolvable:$true] %s189
          %195 = dma.hbm_to_vmem [thread:$0]  %s1, 3072, %s190, [#allocation10], 192, 192, 12
        $region16: #{tpu_custom_call.1} parent=11 // pred_fallthru
          _
        // Predicated region
        $region17: #{tpu_custom_call.1} parent=11 // pred_check
          %p196 = pneg %p98
        $region18: #{tpu_custom_call.1} parent=11 // pred_check_branch
          %198 = sbr.rel (%p196) target = $region20
        $region19: #{tpu_custom_call.1} parent=11 // pred_region
          _
        $region20: #{tpu_custom_call.1} parent=11 // pred_fallthru
          _
        // Predicated region
        $region21: #{tpu_custom_call.1} parent=11 // pred_check
          %p199 = pneg %p119
        $region22: #{tpu_custom_call.1} parent=11 // pred_check_branch
          %201 = sbr.rel (%p199) target = $region24
        $region23: #{tpu_custom_call.1} parent=11 // pred_region
          %s203 = ssub.s32 1024, 1024
          %204 = vsyncadd [#allocation10], %s203
          %s205 = sshll.u32 [#allocation11], 4
          %s206 = int_to_ptr.vmem [resolvable:$true] %s205
          %211 = dma.hbm_to_vmem [thread:$0]  %s3, 1024, %s206, [#allocation10], 64, 64, 4
        $region24: #{tpu_custom_call.1} parent=11 // pred_fallthru
          _
        // Predicated region
        $region25: #{tpu_custom_call.1} parent=11 // pred_check
          %p212 = pneg %p140
        $region26: #{tpu_custom_call.1} parent=11 // pred_check_branch
          %214 = sbr.rel (%p212) target = $region28
        $region27: #{tpu_custom_call.1} parent=11 // pred_region
          _
        $region28: #{tpu_custom_call.1} parent=11 // pred_fallthru
          _
      $region12: #{tpu_custom_call.1} parent=5 // pred_fallthru
        _
      %p215 = scmp.lt.s32.totalorder %s18, 2
      // Predicated region
      $region29: #{tpu_custom_call.1} parent=5 // pred_check
        %p216 = pneg %p215
      $region30: #{tpu_custom_call.1} parent=5 // pred_check_branch
        %218 = sbr.rel (%p216) target = $region32
      $region31: #{tpu_custom_call.1} parent=5 // pred_region
        // Predicated region
        $region33: #{tpu_custom_call.1} parent=31 // pred_check
          %p219 = pneg %p50
        $region34: #{tpu_custom_call.1} parent=31 // pred_check_branch
          %221 = sbr.rel (%p219) target = $region36
        $region35: #{tpu_custom_call.1} parent=31 // pred_region
          %s222 = sand.u32 %s40, 1
          %s223 = scalar_lea.sflag [#allocation7], %s222
          %s224 = sand.u32 %s40, 1
          %s225 = smul.addr %s224, 4
          %s226 = scalar_lea.vmem [#allocation6], %s225
          %s228 = ssub.s32 64, 64
          %229 = vsyncadd %s223, %s228
          %s230 = smul.addr %s25, 64
          %s231 = scalar_lea.hbm %s0, %s230
          %s233 = sshll.u32 %s226, 4
          %s234 = int_to_ptr.vmem [resolvable:$true] %s233
          %236 = dma.hbm_to_vmem [thread:$0]  %s231, 64, %s234, %s223
        $region36: #{tpu_custom_call.1} parent=31 // pred_fallthru
          _
      $region32: #{tpu_custom_call.1} parent=5 // pred_fallthru
        _
      %p237 = scmp.le.s32.totalorder 1, %s18
      %p238 = scmp.lt.s32.totalorder %s18, 3
      %p239 = pnand %p237, %p238
      %p240 = pneg %p239
      // Predicated region
      $region37: #{tpu_custom_call.1} parent=5 // pred_check
        _
      $region38: #{tpu_custom_call.1} parent=5 // pred_check_branch
        %242 = sbr.rel (%p239) target = $region40
      $region39: #{tpu_custom_call.1} parent=5 // pred_region
        %s243 = ssub.s32 %s18, 1
        %s244 = sand.u32 %s43, 1
        %s245 = scalar_lea.sflag [#allocation7], %s244
        %s246 = sand.u32 %s43, 1
        %s247 = smul.addr %s246, 4
        %s248 = scalar_lea.vmem [#allocation6], %s247
        // Predicated region
        $region41: #{tpu_custom_call.1} parent=39 // pred_check
          %p249 = pneg %p56
        $region42: #{tpu_custom_call.1} parent=39 // pred_check_branch
          %251 = sbr.rel (%p249) target = $region44
        $region43: #{tpu_custom_call.1} parent=39 // pred_region
          %252 = dma.done %s245, 64
        $region44: #{tpu_custom_call.1} parent=39 // pred_fallthru
          _
        // Predicated region
        $region45: #{tpu_custom_call.1} parent=39 // pred_check
          %p253 = pneg %p77
        $region46: #{tpu_custom_call.1} parent=39 // pred_check_branch
          %255 = sbr.rel (%p253) target = $region48
        $region47: #{tpu_custom_call.1} parent=39 // pred_region
          %256 = dma.done [#allocation10], 3072
        $region48: #{tpu_custom_call.1} parent=39 // pred_fallthru
          _
        // Predicated region
        $region49: #{tpu_custom_call.1} parent=39 // pred_check
          %p257 = pneg %p119
        $region50: #{tpu_custom_call.1} parent=39 // pred_check_branch
          %259 = sbr.rel (%p257) target = $region52
        $region51: #{tpu_custom_call.1} parent=39 // pred_region
          %260 = dma.done [#allocation10], 1024
        $region52: #{tpu_custom_call.1} parent=39 // pred_fallthru
          _
        %s261 = sand.u32 %s43, 1
        %s262 = scalar_lea.sflag [#allocation7], %s261
        %s263 = sand.u32 %s43, 1
        %s264 = smul.addr %s263, 4
        %s265 = scalar_lea.vmem [#allocation6], %s264
        %p266 = pneg %p56
        %p267 = pneg %p53
        %p268 = pneg %p77
        %p269 = pneg %p74
        %p270 = pneg %p98
        %p271 = pneg %p95
        %p272 = pneg %p119
        %p273 = pneg %p116
        %p274 = pneg %p140
        %p275 = pneg %p137
        %p276 = pneg %p168
        %p277 = pneg %p165
        %s278 = sand.u32 %s155, 1
        %s279 = scalar_lea.sflag [#allocation8], %s278
        %s280 = sand.u32 %s155, 1
        %s281 = smul.addr %s280, 8
        %s282 = scalar_lea.vmem [#allocation12], %s281
        %p284 = scmp.eq.s32.totalorder %s28, 0
        // Predicated region
        $region53: #{tpu_custom_call.1} parent=39 // pred_check
          %p285 = pneg %p284
        $region54: #{tpu_custom_call.1} parent=39 // pred_check_branch
          %287 = sbr.rel (%p285) target = $region56
        $region55: #{tpu_custom_call.1} parent=39 // pred_region
          %v288 = vld [vmem:[%s248] sm:$0xf]
          %v289 = vld [vmem:[#allocation9] sm:$0xff]
          %v290 = vld [vmem:[#allocation9 + $0x8] sm:$0xf]
          %v291 = vld [vmem:[#allocation9 + $0xc] sm:$0xff]
          %v292 = vld [vmem:[#allocation9 + $0x14] sm:$0xf]
          %v293 = vld [vmem:[#allocation9 + $0x18] sm:$0xff]
          %v294 = vld [vmem:[#allocation9 + $0x20] sm:$0xf]
          %v295 = vld [vmem:[#allocation9 + $0x24] sm:$0xff]
          %v296 = vld [vmem:[#allocation9 + $0x2c] sm:$0xf]
          %v297 = vld [vmem:[#allocation9 + $0x30] sm:$0xff]
          %v298 = vld [vmem:[#allocation9 + $0x38] sm:$0xf]
          %v299 = vld [vmem:[#allocation9 + $0x3c] sm:$0xff]
          %v300 = vld [vmem:[#allocation9 + $0x44] sm:$0xf]
          %v301 = vld [vmem:[#allocation9 + $0x48] sm:$0xff]
          %v302 = vld [vmem:[#allocation9 + $0x50] sm:$0xf]
          %v303 = vld [vmem:[#allocation9 + $0x54] sm:$0xff]
          %v304 = vld [vmem:[#allocation9 + $0x5c] sm:$0xf]
          %v305 = vld [vmem:[#allocation9 + $0x60] sm:$0xff]
          %v306 = vld [vmem:[#allocation9 + $0x68] sm:$0xf]
          %v307 = vld [vmem:[#allocation9 + $0x6c] sm:$0xff]
          %v308 = vld [vmem:[#allocation9 + $0x74] sm:$0xf]
          %v309 = vld [vmem:[#allocation9 + $0x78] sm:$0xff]
          %v310 = vld [vmem:[#allocation9 + $0x80] sm:$0xf]
          %v311 = vld [vmem:[#allocation9 + $0x84] sm:$0xff]
          %v312 = vld [vmem:[#allocation9 + $0x8c] sm:$0xf]
          %v313 = vld [vmem:[#allocation9 + $0x90] sm:$0xff]
          %v314 = vld [vmem:[#allocation9 + $0x98] sm:$0xf]
          %v315 = vld [vmem:[#allocation9 + $0x9c] sm:$0xff]
          %v316 = vld [vmem:[#allocation9 + $0xa4] sm:$0xf]
          %v317 = vld [vmem:[#allocation9 + $0xa8] sm:$0xff]
          %v318 = vld [vmem:[#allocation9 + $0xb0] sm:$0xf]
          %v319 = vld [vmem:[#allocation9 + $0xb4] sm:$0xff]
          %v320 = vld [vmem:[#allocation9 + $0xbc] sm:$0xf]
          %v321 = vld [vmem:[%s2] sm:$0x7]
          %v323 = vlaneseq
          %v324 = vshrl.u32 %v323, 7
          %v325 = vsub.s32 0, %v324
          %v326 = vrot.slane %v321, %v325
          %v327 = vlaneseq
          %v328 = vshrl.u32 %v327, 7
          %v329 = vsub.s32 1, %v328
          %v330 = vrot.slane %v321, %v329
          %v331 = vlaneseq
          %v332 = vshrl.u32 %v331, 7
          %v333 = vsub.s32 2, %v332
          %v334 = vrot.slane %v321, %v333
          %v370 = vunpack.c.l.b16 %v289
          %v371 = vunpack.c.h.b16 %v289
          %v372 = vunpack.c.l.b16 %v290
          %v373 = vunpack.c.l.b16 %v291
          %v374 = vunpack.c.h.b16 %v291
          %v375 = vunpack.c.l.b16 %v292
          %v376 = vunpack.c.l.b16 %v293
          %v377 = vunpack.c.h.b16 %v293
          %v378 = vunpack.c.l.b16 %v294
          %v379 = vunpack.c.l.b16 %v295
          %v380 = vunpack.c.h.b16 %v295
          %v381 = vunpack.c.l.b16 %v296
          %v382 = vunpack.c.l.b16 %v297
          %v383 = vunpack.c.h.b16 %v297
          %v384 = vunpack.c.l.b16 %v298
          %v385 = vunpack.c.l.b16 %v299
          %v386 = vunpack.c.h.b16 %v299
          %v387 = vunpack.c.l.b16 %v300
          %v388 = vunpack.c.l.b16 %v301
          %v389 = vunpack.c.h.b16 %v301
          %v390 = vunpack.c.l.b16 %v302
          %v391 = vunpack.c.l.b16 %v303
          %v392 = vunpack.c.h.b16 %v303
          %v393 = vunpack.c.l.b16 %v304
          %v394 = vunpack.c.l.b16 %v305
          %v395 = vunpack.c.h.b16 %v305
          %v396 = vunpack.c.l.b16 %v306
          %v397 = vunpack.c.l.b16 %v307
          %v398 = vunpack.c.h.b16 %v307
          %v399 = vunpack.c.l.b16 %v308
          %v400 = vunpack.c.l.b16 %v309
          %v401 = vunpack.c.h.b16 %v309
          %v402 = vunpack.c.l.b16 %v310
          %v403 = vunpack.c.l.b16 %v311
          %v404 = vunpack.c.h.b16 %v311
          %v405 = vunpack.c.l.b16 %v312
          %v406 = vunpack.c.l.b16 %v313
          %v407 = vunpack.c.h.b16 %v313
          %v408 = vunpack.c.l.b16 %v314
          %v409 = vunpack.c.l.b16 %v315
          %v410 = vunpack.c.h.b16 %v315
          %v411 = vunpack.c.l.b16 %v316
          %v412 = vunpack.c.l.b16 %v317
          %v413 = vunpack.c.h.b16 %v317
          %v414 = vunpack.c.l.b16 %v318
          %v415 = vunpack.c.l.b16 %v319
          %v416 = vunpack.c.h.b16 %v319
          %v417 = vunpack.c.l.b16 %v320
          %v418 = vpack.c.b16 %v373, %v370
          %v419 = vpack.c.b16 %v374, %v371
          %v420 = vpack.c.b16 %v375, %v372
          %v421 = vpack.c.b16 %v379, %v376
          %v422 = vpack.c.b16 %v380, %v377
          %v423 = vpack.c.b16 %v381, %v378
          %v424 = vpack.c.b16 %v385, %v382
          %v425 = vpack.c.b16 %v386, %v383
          %v426 = vpack.c.b16 %v387, %v384
          %v427 = vpack.c.b16 %v391, %v388
          %v428 = vpack.c.b16 %v392, %v389
          %v429 = vpack.c.b16 %v393, %v390
          %v430 = vpack.c.b16 %v397, %v394
          %v431 = vpack.c.b16 %v398, %v395
          %v432 = vpack.c.b16 %v399, %v396
          %v433 = vpack.c.b16 %v403, %v400
          %v434 = vpack.c.b16 %v404, %v401
          %v435 = vpack.c.b16 %v405, %v402
          %v436 = vpack.c.b16 %v409, %v406
          %v437 = vpack.c.b16 %v410, %v407
          %v438 = vpack.c.b16 %v411, %v408
          %v439 = vpack.c.b16 %v415, %v412
          %v440 = vpack.c.b16 %v416, %v413
          %v441 = vpack.c.b16 %v417, %v414
          %466 = vmatprep.subr.bf16.mxu0 %v419
          %467 = vmatpush1.bf16.msra.mxu0 %v418
          %468 = vmatprep.subr.bf16.mxu0 %v422
          %469 = vmatpush1.bf16.msra.mxu0 %v421
          %470 = vmatprep.subr.bf16.mxu0 %v425
          %471 = vmatpush1.bf16.msra.mxu0 %v424
          %472 = vmatprep.subr.bf16.mxu0 %v428
          %473 = vmatpush1.bf16.msra.mxu0 %v427
          %474 = vmatprep.subr.bf16.mxu0 %v431
          %475 = vmatpush1.bf16.msra.mxu0 %v430
          %476 = vmatprep.subr.bf16.mxu0 %v434
          %477 = vmatpush1.bf16.msra.mxu0 %v433
          %478 = vmatprep.subr.bf16.mxu0 %v437
          %479 = vmatpush1.bf16.msra.mxu0 %v436
          %480 = vmatprep.subr.bf16.mxu0 %v440
          %481 = vmatpush1.bf16.msra.mxu0 %v439
          %482 = vmatprep.subr.bf16.mxu0 0
          %483 = vmatpush1.bf16.msra.mxu0 0
          %484 = vmatprep.subr.bf16.mxu0 0
          %485 = vmatpush1.bf16.msra.mxu0 0
          %486 = vmatprep.subr.bf16.mxu0 0
          %487 = vmatpush1.bf16.msra.mxu0 0
          %488 = vmatprep.subr.bf16.mxu0 0
          %489 = vmatpush1.bf16.msra.mxu0 0
          %490 = vmatprep.subr.bf16.mxu0 0
          %491 = vmatpush1.bf16.msra.mxu0 0
          %492 = vmatprep.subr.bf16.mxu0 0
          %493 = vmatpush1.bf16.msra.mxu0 0
          %494 = vmatprep.subr.bf16.mxu0 0
          %495 = vmatpush1.bf16.msra.mxu0 0
          %496 = vmatprep.subr.bf16.mxu0 0
          %497 = vmatpush1.bf16.msra.mxu0 0
          %498 = vmatprep.mubr.bf16.mxu0 0
          %499 = vmatmul.mubr.bf16.gmra.mrb[0].mxu0 %v288
          %v500 = vpop.f32.mrb[0].mxu0
          %v501 = vadd.f32 %v326, %v500
          %v502 = vpop.f32.mrb[0].mxu0
          %v503 = vadd.f32 %v330, %v502
          %v504 = vpop.f32.mrb[0].mxu0
          %v505 = vpop.f32.mrb[0].mxu0
          %506 = vdwg.mxu0
          %507 = vmatprep.subr.bf16.mxu0 0
          %508 = vmatpush1.bf16.msra.mxu0 %v420
          %509 = vmatprep.subr.bf16.mxu0 0
          %510 = vmatpush1.bf16.msra.mxu0 %v423
          %511 = vmatprep.subr.bf16.mxu0 0
          %512 = vmatpush1.bf16.msra.mxu0 %v426
          %513 = vmatprep.subr.bf16.mxu0 0
          %514 = vmatpush1.bf16.msra.mxu0 %v429
          %515 = vmatprep.subr.bf16.mxu0 0
          %516 = vmatpush1.bf16.msra.mxu0 %v432
          %517 = vmatprep.subr.bf16.mxu0 0
          %518 = vmatpush1.bf16.msra.mxu0 %v435
          %519 = vmatprep.subr.bf16.mxu0 0
          %520 = vmatpush1.bf16.msra.mxu0 %v438
          %521 = vmatprep.subr.bf16.mxu0 0
          %522 = vmatpush1.bf16.msra.mxu0 %v441
          %523 = vmatprep.subr.bf16.mxu0 0
          %524 = vmatpush1.bf16.msra.mxu0 0
          %525 = vmatprep.subr.bf16.mxu0 0
          %526 = vmatpush1.bf16.msra.mxu0 0
          %527 = vmatprep.subr.bf16.mxu0 0
          %528 = vmatpush1.bf16.msra.mxu0 0
          %529 = vmatprep.subr.bf16.mxu0 0
          %530 = vmatpush1.bf16.msra.mxu0 0
          %531 = vmatprep.subr.bf16.mxu0 0
          %532 = vmatpush1.bf16.msra.mxu0 0
          %533 = vmatprep.subr.bf16.mxu0 0
          %534 = vmatpush1.bf16.msra.mxu0 0
          %535 = vmatprep.subr.bf16.mxu0 0
          %536 = vmatpush1.bf16.msra.mxu0 0
          %537 = vmatprep.subr.bf16.mxu0 0
          %538 = vmatpush1.bf16.msra.mxu0 0
          %539 = vmatprep.mubr.bf16.mxu0 0
          %540 = vmatmul.mubr.bf16.gmra.mrb[0].mxu0 %v288
          %v541 = vpop.f32.mrb[0].mxu0
          %v542 = vadd.f32 %v334, %v541
          %v543 = vpop.f32.mrb[0].mxu0
          %v544 = vpop.f32.mrb[0].mxu0
          %v545 = vpop.f32.mrb[0].mxu0
          %546 = vdwg.mxu0
          %v547 = vpack.c.bf16 %v501, %v501
          %v548 = vpack.c.bf16 %v503, %v503
          %v549 = vpack.c.bf16 %v542, %v542
          %vm550 = vcmask 125952
          %551 = vst.msk [vmem:[#allocation2] sm:$0xf] %vm550, %v547
          %552 = vst.msk [vmem:[#allocation3] sm:$0xf] %vm550, %v548
          %553 = vst.msk [vmem:[#allocation4] sm:$0xf] %vm550, %v549
          %v555 = vunpack.c.l.b16 %v547
          %v556 = vpack.c.b16 %v555, %v555
          %557 = vrot.lane.b32.xlu0 %v556, 112
          %v558 = vpop.permute.xlu0 %557
          %s560 = scalar_lea.vmem [#allocation2], 4
          %561 = vst.msk [vmem:[%s560] sm:$0xf] %vm550, %v558
          %v563 = vunpack.c.l.b16 %v548
          %v564 = vpack.c.b16 %v563, %v563
          %565 = vrot.lane.b32.xlu0 %v564, 112
          %v566 = vpop.permute.xlu0 %565
          %s568 = scalar_lea.vmem [#allocation3], 4
          %569 = vst.msk [vmem:[%s568] sm:$0xf] %vm550, %v566
          %v571 = vunpack.c.l.b16 %v549
          %v572 = vpack.c.b16 %v571, %v571
          %573 = vrot.lane.b32.xlu0 %v572, 112
          %v574 = vpop.permute.xlu0 %573
          %s576 = scalar_lea.vmem [#allocation4], 4
          %577 = vst.msk [vmem:[%s576] sm:$0xf] %vm550, %v574
          %578 = vrot.lane.b32.xlu0 %v556, 96
          %v579 = vpop.permute.xlu0 %578
          %s581 = scalar_lea.vmem [#allocation2], 8
          %582 = vst.msk [vmem:[%s581] sm:$0xf] %vm550, %v579
          %583 = vrot.lane.b32.xlu0 %v564, 96
          %v584 = vpop.permute.xlu0 %583
          %s586 = scalar_lea.vmem [#allocation3], 8
          %587 = vst.msk [vmem:[%s586] sm:$0xf] %vm550, %v584
          %588 = vrot.lane.b32.xlu0 %v572, 96
          %v589 = vpop.permute.xlu0 %588
          %s591 = scalar_lea.vmem [#allocation4], 8
          %592 = vst.msk [vmem:[%s591] sm:$0xf] %vm550, %v589
          %593 = vrot.lane.b32.xlu0 %v556, 80
          %v594 = vpop.permute.xlu0 %593
          %s596 = scalar_lea.vmem [#allocation2], 12
          %597 = vst.msk [vmem:[%s596] sm:$0xf] %vm550, %v594
          %598 = vrot.lane.b32.xlu0 %v564, 80
          %v599 = vpop.permute.xlu0 %598
          %s601 = scalar_lea.vmem [#allocation3], 12
          %602 = vst.msk [vmem:[%s601] sm:$0xf] %vm550, %v599
          %603 = vrot.lane.b32.xlu0 %v572, 80
          %v604 = vpop.permute.xlu0 %603
          %s606 = scalar_lea.vmem [#allocation4], 12
          %607 = vst.msk [vmem:[%s606] sm:$0xf] %vm550, %v604
          %608 = vrot.lane.b32.xlu0 %v556, 64
          %v609 = vpop.permute.xlu0 %608
          %s611 = scalar_lea.vmem [#allocation2], 16
          %612 = vst.msk [vmem:[%s611] sm:$0xf] %vm550, %v609
          %613 = vrot.lane.b32.xlu0 %v564, 64
          %v614 = vpop.permute.xlu0 %613
          %s616 = scalar_lea.vmem [#allocation3], 16
          %617 = vst.msk [vmem:[%s616] sm:$0xf] %vm550, %v614
          %618 = vrot.lane.b32.xlu0 %v572, 64
          %v619 = vpop.permute.xlu0 %618
          %s621 = scalar_lea.vmem [#allocation4], 16
          %622 = vst.msk [vmem:[%s621] sm:$0xf] %vm550, %v619
          %623 = vrot.lane.b32.xlu0 %v556, 48
          %v624 = vpop.permute.xlu0 %623
          %s626 = scalar_lea.vmem [#allocation2], 20
          %627 = vst.msk [vmem:[%s626] sm:$0xf] %vm550, %v624
          %628 = vrot.lane.b32.xlu0 %v564, 48
          %v629 = vpop.permute.xlu0 %628
          %s631 = scalar_lea.vmem [#allocation3], 20
          %632 = vst.msk [vmem:[%s631] sm:$0xf] %vm550, %v629
          %633 = vrot.lane.b32.xlu0 %v572, 48
          %v634 = vpop.permute.xlu0 %633
          %s636 = scalar_lea.vmem [#allocation4], 20
          %637 = vst.msk [vmem:[%s636] sm:$0xf] %vm550, %v634
          %638 = vrot.lane.b32.xlu0 %v556, 32
          %v639 = vpop.permute.xlu0 %638
          %s641 = scalar_lea.vmem [#allocation2], 24
          %642 = vst.msk [vmem:[%s641] sm:$0xf] %vm550, %v639
          %643 = vrot.lane.b32.xlu0 %v564, 32
          %v644 = vpop.permute.xlu0 %643
          %s646 = scalar_lea.vmem [#allocation3], 24
          %647 = vst.msk [vmem:[%s646] sm:$0xf] %vm550, %v644
          %648 = vrot.lane.b32.xlu0 %v572, 32
          %v649 = vpop.permute.xlu0 %648
          %s651 = scalar_lea.vmem [#allocation4], 24
          %652 = vst.msk [vmem:[%s651] sm:$0xf] %vm550, %v649
          %653 = vrot.lane.b32.xlu0 %v556, 16
          %v654 = vpop.permute.xlu0 %653
          %s656 = scalar_lea.vmem [#allocation2], 28
          %657 = vst.msk [vmem:[%s656] sm:$0xf] %vm550, %v654
          %658 = vrot.lane.b32.xlu0 %v564, 16
          %v659 = vpop.permute.xlu0 %658
          %s661 = scalar_lea.vmem [#allocation3], 28
          %662 = vst.msk [vmem:[%s661] sm:$0xf] %vm550, %v659
          %663 = vrot.lane.b32.xlu0 %v572, 16
          %v664 = vpop.permute.xlu0 %663
          %s666 = scalar_lea.vmem [#allocation4], 28
          %667 = vst.msk [vmem:[%s666] sm:$0xf] %vm550, %v664
        $region56: #{tpu_custom_call.1} parent=39 // pred_fallthru
          _
        %v668 = vld [vmem:[#allocation2] sm:$0xf]
        %v669 = vld [vmem:[#allocation2 + $0x4] sm:$0xf]
        %v670 = vld [vmem:[#allocation2 + $0x8] sm:$0xf]
        %v671 = vld [vmem:[#allocation2 + $0xc] sm:$0xf]
        %v672 = vld [vmem:[#allocation2 + $0x10] sm:$0xf]
        %v673 = vld [vmem:[#allocation2 + $0x14] sm:$0xf]
        %v674 = vld [vmem:[#allocation2 + $0x18] sm:$0xf]
        %v675 = vld [vmem:[#allocation2 + $0x1c] sm:$0xf]
        %v676 = vld [vmem:[#allocation3] sm:$0xf]
        %v677 = vld [vmem:[#allocation3 + $0x4] sm:$0xf]
        %v678 = vld [vmem:[#allocation3 + $0x8] sm:$0xf]
        %v679 = vld [vmem:[#allocation3 + $0xc] sm:$0xf]
        %v680 = vld [vmem:[#allocation3 + $0x10] sm:$0xf]
        %v681 = vld [vmem:[#allocation3 + $0x14] sm:$0xf]
        %v682 = vld [vmem:[#allocation3 + $0x18] sm:$0xf]
        %v683 = vld [vmem:[#allocation3 + $0x1c] sm:$0xf]
        %v684 = vld [vmem:[#allocation4] sm:$0xf]
        %v685 = vld [vmem:[#allocation4 + $0x4] sm:$0xf]
        %v686 = vld [vmem:[#allocation4 + $0x8] sm:$0xf]
        %v687 = vld [vmem:[#allocation4 + $0xc] sm:$0xf]
        %v688 = vld [vmem:[#allocation4 + $0x10] sm:$0xf]
        %v689 = vld [vmem:[#allocation4 + $0x14] sm:$0xf]
        %v690 = vld [vmem:[#allocation4 + $0x18] sm:$0xf]
        %v691 = vld [vmem:[#allocation4 + $0x1c] sm:$0xf]
        %vm692 = vcmask 130048
        %v694 = vsel %vm692, %v668, 0
        %v697 = vsel %vm692, %v676, 0
        %699 = vmatprep.subr.bf16.mxu0 0
        %700 = vmatpush1.bf16.xpose.msra.mxu0 %v697
        %701 = vmatprep.subr.bf16.mxu0 0
        %702 = vmatpush1.bf16.xpose.msra.mxu0 0
        %703 = vmatprep.subr.bf16.mxu0 0
        %704 = vmatpush1.bf16.xpose.msra.mxu0 0
        %705 = vmatprep.subr.bf16.mxu0 0
        %706 = vmatpush1.bf16.xpose.msra.mxu0 0
        %707 = vmatprep.subr.bf16.mxu0 0
        %708 = vmatpush1.bf16.xpose.msra.mxu0 0
        %709 = vmatprep.subr.bf16.mxu0 0
        %710 = vmatpush1.bf16.xpose.msra.mxu0 0
        %711 = vmatprep.subr.bf16.mxu0 0
        %712 = vmatpush1.bf16.xpose.msra.mxu0 0
        %713 = vmatprep.subr.bf16.mxu0 0
        %714 = vmatpush1.bf16.xpose.msra.mxu0 0
        %715 = vmatprep.subr.bf16.mxu0 0
        %716 = vmatpush1.bf16.xpose.msra.mxu0 0
        %717 = vmatprep.subr.bf16.mxu0 0
        %718 = vmatpush1.bf16.xpose.msra.mxu0 0
        %719 = vmatprep.subr.bf16.mxu0 0
        %720 = vmatpush1.bf16.xpose.msra.mxu0 0
        %721 = vmatprep.subr.bf16.mxu0 0
        %722 = vmatpush1.bf16.xpose.msra.mxu0 0
        %723 = vmatprep.subr.bf16.mxu0 0
        %724 = vmatpush1.bf16.xpose.msra.mxu0 0
        %725 = vmatprep.subr.bf16.mxu0 0
        %726 = vmatpush1.bf16.xpose.msra.mxu0 0
        %727 = vmatprep.subr.bf16.mxu0 0
        %728 = vmatpush1.bf16.xpose.msra.mxu0 0
        %729 = vmatprep.subr.bf16.mxu0 0
        %730 = vmatpush1.bf16.xpose.msra.mxu0 0
        %731 = vmatprep.mubr.bf16.mxu0 0
        %732 = vmatmul.mubr.bf16.gmra.mrb[0].mxu0 %v694
        %v733 = vpop.f32.mrb[0].mxu0
        %v734 = vadd.f32 0.0, %v733
        %v735 = vpop.f32.mrb[0].mxu0
        %v736 = vpop.f32.mrb[0].mxu0
        %v737 = vpop.f32.mrb[0].mxu0
        %738 = vdwg.mxu0
        %v740 = vsel %vm692, %v669, 0
        %v743 = vsel %vm692, %v677, 0
        %745 = vmatprep.subr.bf16.mxu0 0
        %746 = vmatpush1.bf16.xpose.msra.mxu0 %v743
        %747 = vmatprep.subr.bf16.mxu0 0
        %748 = vmatpush1.bf16.xpose.msra.mxu0 0
        %749 = vmatprep.subr.bf16.mxu0 0
        %750 = vmatpush1.bf16.xpose.msra.mxu0 0
        %751 = vmatprep.subr.bf16.mxu0 0
        %752 = vmatpush1.bf16.xpose.msra.mxu0 0
        %753 = vmatprep.subr.bf16.mxu0 0
        %754 = vmatpush1.bf16.xpose.msra.mxu0 0
        %755 = vmatprep.subr.bf16.mxu0 0
        %756 = vmatpush1.bf16.xpose.msra.mxu0 0
        %757 = vmatprep.subr.bf16.mxu0 0
        %758 = vmatpush1.bf16.xpose.msra.mxu0 0
        %759 = vmatprep.subr.bf16.mxu0 0
        %760 = vmatpush1.bf16.xpose.msra.mxu0 0
        %761 = vmatprep.subr.bf16.mxu0 0
        %762 = vmatpush1.bf16.xpose.msra.mxu0 0
        %763 = vmatprep.subr.bf16.mxu0 0
        %764 = vmatpush1.bf16.xpose.msra.mxu0 0
        %765 = vmatprep.subr.bf16.mxu0 0
        %766 = vmatpush1.bf16.xpose.msra.mxu0 0
        %767 = vmatprep.subr.bf16.mxu0 0
        %768 = vmatpush1.bf16.xpose.msra.mxu0 0
        %769 = vmatprep.subr.bf16.mxu0 0
        %770 = vmatpush1.bf16.xpose.msra.mxu0 0
        %771 = vmatprep.subr.bf16.mxu0 0
        %772 = vmatpush1.bf16.xpose.msra.mxu0 0
        %773 = vmatprep.subr.bf16.mxu0 0
        %774 = vmatpush1.bf16.xpose.msra.mxu0 0
        %775 = vmatprep.subr.bf16.mxu0 0
        %776 = vmatpush1.bf16.xpose.msra.mxu0 0
        %777 = vmatprep.mubr.bf16.mxu0 0
        %778 = vmatmul.mubr.bf16.gmra.mrb[0].mxu0 %v740
        %v779 = vpop.f32.mrb[0].mxu0
        %v780 = vadd.f32 0.0, %v779
        %v781 = vpop.f32.mrb[0].mxu0
        %v782 = vpop.f32.mrb[0].mxu0
        %v783 = vpop.f32.mrb[0].mxu0
        %784 = vdwg.mxu0
        %v786 = vsel %vm692, %v670, 0
        %v789 = vsel %vm692, %v678, 0
        %791 = vmatprep.subr.bf16.mxu0 0
        %792 = vmatpush1.bf16.xpose.msra.mxu0 %v789
        %793 = vmatprep.subr.bf16.mxu0 0
        %794 = vmatpush1.bf16.xpose.msra.mxu0 0
        %795 = vmatprep.subr.bf16.mxu0 0
        %796 = vmatpush1.bf16.xpose.msra.mxu0 0
        %797 = vmatprep.subr.bf16.mxu0 0
        %798 = vmatpush1.bf16.xpose.msra.mxu0 0
        %799 = vmatprep.subr.bf16.mxu0 0
        %800 = vmatpush1.bf16.xpose.msra.mxu0 0
        %801 = vmatprep.subr.bf16.mxu0 0
        %802 = vmatpush1.bf16.xpose.msra.mxu0 0
        %803 = vmatprep.subr.bf16.mxu0 0
        %804 = vmatpush1.bf16.xpose.msra.mxu0 0
        %805 = vmatprep.subr.bf16.mxu0 0
        %806 = vmatpush1.bf16.xpose.msra.mxu0 0
        %807 = vmatprep.subr.bf16.mxu0 0
        %808 = vmatpush1.bf16.xpose.msra.mxu0 0
        %809 = vmatprep.subr.bf16.mxu0 0
        %810 = vmatpush1.bf16.xpose.msra.mxu0 0
        %811 = vmatprep.subr.bf16.mxu0 0
        %812 = vmatpush1.bf16.xpose.msra.mxu0 0
        %813 = vmatprep.subr.bf16.mxu0 0
        %814 = vmatpush1.bf16.xpose.msra.mxu0 0
        %815 = vmatprep.subr.bf16.mxu0 0
        %816 = vmatpush1.bf16.xpose.msra.mxu0 0
        %817 = vmatprep.subr.bf16.mxu0 0
        %818 = vmatpush1.bf16.xpose.msra.mxu0 0
        %819 = vmatprep.subr.bf16.mxu0 0
        %820 = vmatpush1.bf16.xpose.msra.mxu0 0
        %821 = vmatprep.subr.bf16.mxu0 0
        %822 = vmatpush1.bf16.xpose.msra.mxu0 0
        %823 = vmatprep.mubr.bf16.mxu0 0
        %824 = vmatmul.mubr.bf16.gmra.mrb[0].mxu0 %v786
        %v825 = vpop.f32.mrb[0].mxu0
        %v826 = vadd.f32 0.0, %v825
        %v827 = vpop.f32.mrb[0].mxu0
        %v828 = vpop.f32.mrb[0].mxu0
        %v829 = vpop.f32.mrb[0].mxu0
        %830 = vdwg.mxu0
        %v832 = vsel %vm692, %v671, 0
        %v835 = vsel %vm692, %v679, 0
        %837 = vmatprep.subr.bf16.mxu0 0
        %838 = vmatpush1.bf16.xpose.msra.mxu0 %v835
        %839 = vmatprep.subr.bf16.mxu0 0
        %840 = vmatpush1.bf16.xpose.msra.mxu0 0
        %841 = vmatprep.subr.bf16.mxu0 0
        %842 = vmatpush1.bf16.xpose.msra.mxu0 0
        %843 = vmatprep.subr.bf16.mxu0 0
        %844 = vmatpush1.bf16.xpose.msra.mxu0 0
        %845 = vmatprep.subr.bf16.mxu0 0
        %846 = vmatpush1.bf16.xpose.msra.mxu0 0
        %847 = vmatprep.subr.bf16.mxu0 0
        %848 = vmatpush1.bf16.xpose.msra.mxu0 0
        %849 = vmatprep.subr.bf16.mxu0 0
        %850 = vmatpush1.bf16.xpose.msra.mxu0 0
        %851 = vmatprep.subr.bf16.mxu0 0
        %852 = vmatpush1.bf16.xpose.msra.mxu0 0
        %853 = vmatprep.subr.bf16.mxu0 0
        %854 = vmatpush1.bf16.xpose.msra.mxu0 0
        %855 = vmatprep.subr.bf16.mxu0 0
        %856 = vmatpush1.bf16.xpose.msra.mxu0 0
        %857 = vmatprep.subr.bf16.mxu0 0
        %858 = vmatpush1.bf16.xpose.msra.mxu0 0
        %859 = vmatprep.subr.bf16.mxu0 0
        %860 = vmatpush1.bf16.xpose.msra.mxu0 0
        %861 = vmatprep.subr.bf16.mxu0 0
        %862 = vmatpush1.bf16.xpose.msra.mxu0 0
        %863 = vmatprep.subr.bf16.mxu0 0
        %864 = vmatpush1.bf16.xpose.msra.mxu0 0
        %865 = vmatprep.subr.bf16.mxu0 0
        %866 = vmatpush1.bf16.xpose.msra.mxu0 0
        %867 = vmatprep.subr.bf16.mxu0 0
        %868 = vmatpush1.bf16.xpose.msra.mxu0 0
        %869 = vmatprep.mubr.bf16.mxu0 0
        %870 = vmatmul.mubr.bf16.gmra.mrb[0].mxu0 %v832
        %v871 = vpop.f32.mrb[0].mxu0
        %v872 = vadd.f32 0.0, %v871
        %v873 = vpop.f32.mrb[0].mxu0
        %v874 = vpop.f32.mrb[0].mxu0
        %v875 = vpop.f32.mrb[0].mxu0
        %876 = vdwg.mxu0
        %v878 = vsel %vm692, %v672, 0
        %v881 = vsel %vm692, %v680, 0
        %883 = vmatprep.subr.bf16.mxu0 0
        %884 = vmatpush1.bf16.xpose.msra.mxu0 %v881
        %885 = vmatprep.subr.bf16.mxu0 0
        %886 = vmatpush1.bf16.xpose.msra.mxu0 0
        %887 = vmatprep.subr.bf16.mxu0 0
        %888 = vmatpush1.bf16.xpose.msra.mxu0 0
        %889 = vmatprep.subr.bf16.mxu0 0
        %890 = vmatpush1.bf16.xpose.msra.mxu0 0
        %891 = vmatprep.subr.bf16.mxu0 0
        %892 = vmatpush1.bf16.xpose.msra.mxu0 0
        %893 = vmatprep.subr.bf16.mxu0 0
        %894 = vmatpush1.bf16.xpose.msra.mxu0 0
        %895 = vmatprep.subr.bf16.mxu0 0
        %896 = vmatpush1.bf16.xpose.msra.mxu0 0
        %897 = vmatprep.subr.bf16.mxu0 0
        %898 = vmatpush1.bf16.xpose.msra.mxu0 0
        %899 = vmatprep.subr.bf16.mxu0 0
        %900 = vmatpush1.bf16.xpose.msra.mxu0 0
        %901 = vmatprep.subr.bf16.mxu0 0
        %902 = vmatpush1.bf16.xpose.msra.mxu0 0
        %903 = vmatprep.subr.bf16.mxu0 0
        %904 = vmatpush1.bf16.xpose.msra.mxu0 0
        %905 = vmatprep.subr.bf16.mxu0 0
        %906 = vmatpush1.bf16.xpose.msra.mxu0 0
        %907 = vmatprep.subr.bf16.mxu0 0
        %908 = vmatpush1.bf16.xpose.msra.mxu0 0
        %909 = vmatprep.subr.bf16.mxu0 0
        %910 = vmatpush1.bf16.xpose.msra.mxu0 0
        %911 = vmatprep.subr.bf16.mxu0 0
        %912 = vmatpush1.bf16.xpose.msra.mxu0 0
        %913 = vmatprep.subr.bf16.mxu0 0
        %914 = vmatpush1.bf16.xpose.msra.mxu0 0
        %915 = vmatprep.mubr.bf16.mxu0 0
        %916 = vmatmul.mubr.bf16.gmra.mrb[0].mxu0 %v878
        %v917 = vpop.f32.mrb[0].mxu0
        %v918 = vadd.f32 0.0, %v917
        %v919 = vpop.f32.mrb[0].mxu0
        %v920 = vpop.f32.mrb[0].mxu0
        %v921 = vpop.f32.mrb[0].mxu0
        %922 = vdwg.mxu0
        %v924 = vsel %vm692, %v673, 0
        %v927 = vsel %vm692, %v681, 0
        %929 = vmatprep.subr.bf16.mxu0 0
        %930 = vmatpush1.bf16.xpose.msra.mxu0 %v927
        %931 = vmatprep.subr.bf16.mxu0 0
        %932 = vmatpush1.bf16.xpose.msra.mxu0 0
        %933 = vmatprep.subr.bf16.mxu0 0
        %934 = vmatpush1.bf16.xpose.msra.mxu0 0
        %935 = vmatprep.subr.bf16.mxu0 0
        %936 = vmatpush1.bf16.xpose.msra.mxu0 0
        %937 = vmatprep.subr.bf16.mxu0 0
        %938 = vmatpush1.bf16.xpose.msra.mxu0 0
        %939 = vmatprep.subr.bf16.mxu0 0
        %940 = vmatpush1.bf16.xpose.msra.mxu0 0
        %941 = vmatprep.subr.bf16.mxu0 0
        %942 = vmatpush1.bf16.xpose.msra.mxu0 0
        %943 = vmatprep.subr.bf16.mxu0 0
        %944 = vmatpush1.bf16.xpose.msra.mxu0 0
        %945 = vmatprep.subr.bf16.mxu0 0
        %946 = vmatpush1.bf16.xpose.msra.mxu0 0
        %947 = vmatprep.subr.bf16.mxu0 0
        %948 = vmatpush1.bf16.xpose.msra.mxu0 0
        %949 = vmatprep.subr.bf16.mxu0 0
        %950 = vmatpush1.bf16.xpose.msra.mxu0 0
        %951 = vmatprep.subr.bf16.mxu0 0
        %952 = vmatpush1.bf16.xpose.msra.mxu0 0
        %953 = vmatprep.subr.bf16.mxu0 0
        %954 = vmatpush1.bf16.xpose.msra.mxu0 0
        %955 = vmatprep.subr.bf16.mxu0 0
        %956 = vmatpush1.bf16.xpose.msra.mxu0 0
        %957 = vmatprep.subr.bf16.mxu0 0
        %958 = vmatpush1.bf16.xpose.msra.mxu0 0
        %959 = vmatprep.subr.bf16.mxu0 0
        %960 = vmatpush1.bf16.xpose.msra.mxu0 0
        %961 = vmatprep.mubr.bf16.mxu0 0
        %962 = vmatmul.mubr.bf16.gmra.mrb[0].mxu0 %v924
        %v963 = vpop.f32.mrb[0].mxu0
        %v964 = vadd.f32 0.0, %v963
        %v965 = vpop.f32.mrb[0].mxu0
        %v966 = vpop.f32.mrb[0].mxu0
        %v967 = vpop.f32.mrb[0].mxu0
        %968 = vdwg.mxu0
        %v970 = vsel %vm692, %v674, 0
        %v973 = vsel %vm692, %v682, 0
        %975 = vmatprep.subr.bf16.mxu0 0
        %976 = vmatpush1.bf16.xpose.msra.mxu0 %v973
        %977 = vmatprep.subr.bf16.mxu0 0
        %978 = vmatpush1.bf16.xpose.msra.mxu0 0
        %979 = vmatprep.subr.bf16.mxu0 0
        %980 = vmatpush1.bf16.xpose.msra.mxu0 0
        %981 = vmatprep.subr.bf16.mxu0 0
        %982 = vmatpush1.bf16.xpose.msra.mxu0 0
        %983 = vmatprep.subr.bf16.mxu0 0
        %984 = vmatpush1.bf16.xpose.msra.mxu0 0
        %985 = vmatprep.subr.bf16.mxu0 0
        %986 = vmatpush1.bf16.xpose.msra.mxu0 0
        %987 = vmatprep.subr.bf16.mxu0 0
        %988 = vmatpush1.bf16.xpose.msra.mxu0 0
        %989 = vmatprep.subr.bf16.mxu0 0
        %990 = vmatpush1.bf16.xpose.msra.mxu0 0
        %991 = vmatprep.subr.bf16.mxu0 0
        %992 = vmatpush1.bf16.xpose.msra.mxu0 0
        %993 = vmatprep.subr.bf16.mxu0 0
        %994 = vmatpush1.bf16.xpose.msra.mxu0 0
        %995 = vmatprep.subr.bf16.mxu0 0
        %996 = vmatpush1.bf16.xpose.msra.mxu0 0
        %997 = vmatprep.subr.bf16.mxu0 0
        %998 = vmatpush1.bf16.xpose.msra.mxu0 0
        %999 = vmatprep.subr.bf16.mxu0 0
        %1000 = vmatpush1.bf16.xpose.msra.mxu0 0
        %1001 = vmatprep.subr.bf16.mxu0 0
        %1002 = vmatpush1.bf16.xpose.msra.mxu0 0
        %1003 = vmatprep.subr.bf16.mxu0 0
        %1004 = vmatpush1.bf16.xpose.msra.mxu0 0
        %1005 = vmatprep.subr.bf16.mxu0 0
        %1006 = vmatpush1.bf16.xpose.msra.mxu0 0
        %1007 = vmatprep.mubr.bf16.mxu0 0
        %1008 = vmatmul.mubr.bf16.gmra.mrb[0].mxu0 %v970
        %v1009 = vpop.f32.mrb[0].mxu0
        %v1010 = vadd.f32 0.0, %v1009
        %v1011 = vpop.f32.mrb[0].mxu0
        %v1012 = vpop.f32.mrb[0].mxu0
        %v1013 = vpop.f32.mrb[0].mxu0
        %1014 = vdwg.mxu0
        %v1016 = vsel %vm692, %v675, 0
        %v1019 = vsel %vm692, %v683, 0
        %1021 = vmatprep.subr.bf16.mxu0 0
        %1022 = vmatpush1.bf16.xpose.msra.mxu0 %v1019
        %1023 = vmatprep.subr.bf16.mxu0 0
        %1024 = vmatpush1.bf16.xpose.msra.mxu0 0
        %1025 = vmatprep.subr.bf16.mxu0 0
        %1026 = vmatpush1.bf16.xpose.msra.mxu0 0
        %1027 = vmatprep.subr.bf16.mxu0 0
        %1028 = vmatpush1.bf16.xpose.msra.mxu0 0
        %1029 = vmatprep.subr.bf16.mxu0 0
        %1030 = vmatpush1.bf16.xpose.msra.mxu0 0
        %1031 = vmatprep.subr.bf16.mxu0 0
        %1032 = vmatpush1.bf16.xpose.msra.mxu0 0
        %1033 = vmatprep.subr.bf16.mxu0 0
        %1034 = vmatpush1.bf16.xpose.msra.mxu0 0
        %1035 = vmatprep.subr.bf16.mxu0 0
        %1036 = vmatpush1.bf16.xpose.msra.mxu0 0
        %1037 = vmatprep.subr.bf16.mxu0 0
        %1038 = vmatpush1.bf16.xpose.msra.mxu0 0
        %1039 = vmatprep.subr.bf16.mxu0 0
        %1040 = vmatpush1.bf16.xpose.msra.mxu0 0
        %1041 = vmatprep.subr.bf16.mxu0 0
        %1042 = vmatpush1.bf16.xpose.msra.mxu0 0
        %1043 = vmatprep.subr.bf16.mxu0 0
        %1044 = vmatpush1.bf16.xpose.msra.mxu0 0
        %1045 = vmatprep.subr.bf16.mxu0 0
        %1046 = vmatpush1.bf16.xpose.msra.mxu0 0
        %1047 = vmatprep.subr.bf16.mxu0 0
        %1048 = vmatpush1.bf16.xpose.msra.mxu0 0
        %1049 = vmatprep.subr.bf16.mxu0 0
        %1050 = vmatpush1.bf16.xpose.msra.mxu0 0
        %1051 = vmatprep.subr.bf16.mxu0 0
        %1052 = vmatpush1.bf16.xpose.msra.mxu0 0
        %1053 = vmatprep.mubr.bf16.mxu0 0
        %1054 = vmatmul.mubr.bf16.gmra.mrb[0].mxu0 %v1016
        %v1055 = vpop.f32.mrb[0].mxu0
        %v1056 = vadd.f32 0.0, %v1055
        %v1057 = vpop.f32.mrb[0].mxu0
        %v1058 = vpop.f32.mrb[0].mxu0
        %v1059 = vpop.f32.mrb[0].mxu0
        %1060 = vdwg.mxu0
        %vm1061 = vcmask 64512
        %v1062 = vsel %vm1061, %v734, -inf
        %1063 = vmax.xlane.f32.xlu0 %v1062
        %v1064 = vpop.xlane.xlu0 %1063
        %v1065 = vsel %vm1061, %v780, -inf
        %1066 = vmax.xlane.f32.xlu0 %v1065
        %v1067 = vpop.xlane.xlu0 %1066
        %v1068 = vsel %vm1061, %v826, -inf
        %1069 = vmax.xlane.f32.xlu0 %v1068
        %v1070 = vpop.xlane.xlu0 %1069
        %v1071 = vsel %vm1061, %v872, -inf
        %1072 = vmax.xlane.f32.xlu0 %v1071
        %v1073 = vpop.xlane.xlu0 %1072
        %v1074 = vsel %vm1061, %v918, -inf
        %1075 = vmax.xlane.f32.xlu0 %v1074
        %v1076 = vpop.xlane.xlu0 %1075
        %v1077 = vsel %vm1061, %v964, -inf
        %1078 = vmax.xlane.f32.xlu0 %v1077
        %v1079 = vpop.xlane.xlu0 %1078
        %v1080 = vsel %vm1061, %v1010, -inf
        %1081 = vmax.xlane.f32.xlu0 %v1080
        %v1082 = vpop.xlane.xlu0 %1081
        %v1083 = vsel %vm1061, %v1056, -inf
        %1084 = vmax.xlane.f32.xlu0 %v1083
        %v1085 = vpop.xlane.xlu0 %1084
        %v1086 = vsub.f32 %v734, %v1064
        %v1087 = vsub.f32 %v780, %v1067
        %v1088 = vsub.f32 %v826, %v1070
        %v1089 = vsub.f32 %v872, %v1073
        %v1090 = vsub.f32 %v918, %v1076
        %v1091 = vsub.f32 %v964, %v1079
        %v1092 = vsub.f32 %v1010, %v1082
        %v1093 = vsub.f32 %v1056, %v1085
        %v1094 = vmul.f32 %v1086, 1.442695
        %v1095 = vpow.pop %v1094
        %v1096 = vmul.f32 %v1087, 1.442695
        %v1097 = vpow.pop %v1096
        %v1098 = vmul.f32 %v1088, 1.442695
        %v1099 = vpow.pop %v1098
        %v1100 = vmul.f32 %v1089, 1.442695
        %v1101 = vpow.pop %v1100
        %v1102 = vmul.f32 %v1090, 1.442695
        %v1103 = vpow.pop %v1102
        %v1104 = vmul.f32 %v1091, 1.442695
        %v1105 = vpow.pop %v1104
        %v1106 = vmul.f32 %v1092, 1.442695
        %v1107 = vpow.pop %v1106
        %v1108 = vmul.f32 %v1093, 1.442695
        %v1109 = vpow.pop %v1108
        %v1110 = vsel %vm1061, %v1095, 0.0
        %1111 = vadd.xlane.f32.xlu0 %v1110
        %v1112 = vpop.xlane.xlu0 %1111
        %v1113 = vsel %vm1061, %v1097, 0.0
        %1114 = vadd.xlane.f32.xlu0 %v1113
        %v1115 = vpop.xlane.xlu0 %1114
        %v1116 = vsel %vm1061, %v1099, 0.0
        %1117 = vadd.xlane.f32.xlu0 %v1116
        %v1118 = vpop.xlane.xlu0 %1117
        %v1119 = vsel %vm1061, %v1101, 0.0
        %1120 = vadd.xlane.f32.xlu0 %v1119
        %v1121 = vpop.xlane.xlu0 %1120
        %v1122 = vsel %vm1061, %v1103, 0.0
        %1123 = vadd.xlane.f32.xlu0 %v1122
        %v1124 = vpop.xlane.xlu0 %1123
        %v1125 = vsel %vm1061, %v1105, 0.0
        %1126 = vadd.xlane.f32.xlu0 %v1125
        %v1127 = vpop.xlane.xlu0 %1126
        %v1128 = vsel %vm1061, %v1107, 0.0
        %1129 = vadd.xlane.f32.xlu0 %v1128
        %v1130 = vpop.xlane.xlu0 %1129
        %v1131 = vsel %vm1061, %v1109, 0.0
        %1132 = vadd.xlane.f32.xlu0 %v1131
        %v1133 = vpop.xlane.xlu0 %1132
        %v1134 = vpack.c.bf16 %v1095, %v1095
        %v1135 = vpack.c.bf16 %v1097, %v1097
        %v1136 = vpack.c.bf16 %v1099, %v1099
        %v1137 = vpack.c.bf16 %v1101, %v1101
        %v1138 = vpack.c.bf16 %v1103, %v1103
        %v1139 = vpack.c.bf16 %v1105, %v1105
        %v1140 = vpack.c.bf16 %v1107, %v1107
        %v1141 = vpack.c.bf16 %v1109, %v1109
        %v1143 = vsel %vm1061, %v1134, 0
        %vm1145 = vcmask 1043456
        %v1147 = vsel %vm1145, %v684, 0
        %1149 = vmatprep.subr.bf16.mxu0 0
        %1150 = vmatpush1.bf16.msra.mxu0 %v1147
        %1151 = vmatprep.subr.bf16.mxu0 0
        %1152 = vmatpush1.bf16.msra.mxu0 0
        %1153 = vmatprep.subr.bf16.mxu0 0
        %1154 = vmatpush1.bf16.msra.mxu0 0
        %1155 = vmatprep.subr.bf16.mxu0 0
        %1156 = vmatpush1.bf16.msra.mxu0 0
        %1157 = vmatprep.subr.bf16.mxu0 0
        %1158 = vmatpush1.bf16.msra.mxu0 0
        %1159 = vmatprep.subr.bf16.mxu0 0
        %1160 = vmatpush1.bf16.msra.mxu0 0
        %1161 = vmatprep.subr.bf16.mxu0 0
        %1162 = vmatpush1.bf16.msra.mxu0 0
        %1163 = vmatprep.subr.bf16.mxu0 0
        %1164 = vmatpush1.bf16.msra.mxu0 0
        %1165 = vmatprep.subr.bf16.mxu0 0
        %1166 = vmatpush1.bf16.msra.mxu0 0
        %1167 = vmatprep.subr.bf16.mxu0 0
        %1168 = vmatpush1.bf16.msra.mxu0 0
        %1169 = vmatprep.subr.bf16.mxu0 0
        %1170 = vmatpush1.bf16.msra.mxu0 0
        %1171 = vmatprep.subr.bf16.mxu0 0
        %1172 = vmatpush1.bf16.msra.mxu0 0
        %1173 = vmatprep.subr.bf16.mxu0 0
        %1174 = vmatpush1.bf16.msra.mxu0 0
        %1175 = vmatprep.subr.bf16.mxu0 0
        %1176 = vmatpush1.bf16.msra.mxu0 0
        %1177 = vmatprep.subr.bf16.mxu0 0
        %1178 = vmatpush1.bf16.msra.mxu0 0
        %1179 = vmatprep.subr.bf16.mxu0 0
        %1180 = vmatpush1.bf16.msra.mxu0 0
        %1181 = vmatprep.mubr.bf16.mxu0 0
        %1182 = vmatmul.mubr.bf16.gmra.mrb[0].mxu0 %v1143
        %v1183 = vpop.f32.mrb[0].mxu0
        %v1184 = vadd.f32 0.0, %v1183
        %v1185 = vpop.f32.mrb[0].mxu0
        %v1186 = vpop.f32.mrb[0].mxu0
        %v1187 = vpop.f32.mrb[0].mxu0
        %1188 = vdwg.mxu0
        %v1190 = vsel %vm1061, %v1135, 0
        %v1193 = vsel %vm1145, %v685, 0
        %1195 = vmatprep.subr.bf16.mxu0 0
        %1196 = vmatpush1.bf16.msra.mxu0 %v1193
        %1197 = vmatprep.subr.bf16.mxu0 0
        %1198 = vmatpush1.bf16.msra.mxu0 0
        %1199 = vmatprep.subr.bf16.mxu0 0
        %1200 = vmatpush1.bf16.msra.mxu0 0
        %1201 = vmatprep.subr.bf16.mxu0 0
        %1202 = vmatpush1.bf16.msra.mxu0 0
        %1203 = vmatprep.subr.bf16.mxu0 0
        %1204 = vmatpush1.bf16.msra.mxu0 0
        %1205 = vmatprep.subr.bf16.mxu0 0
        %1206 = vmatpush1.bf16.msra.mxu0 0
        %1207 = vmatprep.subr.bf16.mxu0 0
        %1208 = vmatpush1.bf16.msra.mxu0 0
        %1209 = vmatprep.subr.bf16.mxu0 0
        %1210 = vmatpush1.bf16.msra.mxu0 0
        %1211 = vmatprep.subr.bf16.mxu0 0
        %1212 = vmatpush1.bf16.msra.mxu0 0
        %1213 = vmatprep.subr.bf16.mxu0 0
        %1214 = vmatpush1.bf16.msra.mxu0 0
        %1215 = vmatprep.subr.bf16.mxu0 0
        %1216 = vmatpush1.bf16.msra.mxu0 0
        %1217 = vmatprep.subr.bf16.mxu0 0
        %1218 = vmatpush1.bf16.msra.mxu0 0
        %1219 = vmatprep.subr.bf16.mxu0 0
        %1220 = vmatpush1.bf16.msra.mxu0 0
        %1221 = vmatprep.subr.bf16.mxu0 0
        %1222 = vmatpush1.bf16.msra.mxu0 0
        %1223 = vmatprep.subr.bf16.mxu0 0
        %1224 = vmatpush1.bf16.msra.mxu0 0
        %1225 = vmatprep.subr.bf16.mxu0 0
        %1226 = vmatpush1.bf16.msra.mxu0 0
        %1227 = vmatprep.mubr.bf16.mxu0 0
        %1228 = vmatmul.mubr.bf16.gmra.mrb[0].mxu0 %v1190
        %v1229 = vpop.f32.mrb[0].mxu0
        %v1230 = vadd.f32 0.0, %v1229
        %v1231 = vpop.f32.mrb[0].mxu0
        %v1232 = vpop.f32.mrb[0].mxu0
        %v1233 = vpop.f32.mrb[0].mxu0
        %1234 = vdwg.mxu0
        %v1236 = vsel %vm1061, %v1136, 0
        %v1239 = vsel %vm1145, %v686, 0
        %1241 = vmatprep.subr.bf16.mxu0 0
        %1242 = vmatpush1.bf16.msra.mxu0 %v1239
        %1243 = vmatprep.subr.bf16.mxu0 0
        %1244 = vmatpush1.bf16.msra.mxu0 0
        %1245 = vmatprep.subr.bf16.mxu0 0
        %1246 = vmatpush1.bf16.msra.mxu0 0
        %1247 = vmatprep.subr.bf16.mxu0 0
        %1248 = vmatpush1.bf16.msra.mxu0 0
        %1249 = vmatprep.subr.bf16.mxu0 0
        %1250 = vmatpush1.bf16.msra.mxu0 0
        %1251 = vmatprep.subr.bf16.mxu0 0
        %1252 = vmatpush1.bf16.msra.mxu0 0
        %1253 = vmatprep.subr.bf16.mxu0 0
        %1254 = vmatpush1.bf16.msra.mxu0 0
        %1255 = vmatprep.subr.bf16.mxu0 0
        %1256 = vmatpush1.bf16.msra.mxu0 0
        %1257 = vmatprep.subr.bf16.mxu0 0
        %1258 = vmatpush1.bf16.msra.mxu0 0
        %1259 = vmatprep.subr.bf16.mxu0 0
        %1260 = vmatpush1.bf16.msra.mxu0 0
        %1261 = vmatprep.subr.bf16.mxu0 0
        %1262 = vmatpush1.bf16.msra.mxu0 0
        %1263 = vmatprep.subr.bf16.mxu0 0
        %1264 = vmatpush1.bf16.msra.mxu0 0
        %1265 = vmatprep.subr.bf16.mxu0 0
        %1266 = vmatpush1.bf16.msra.mxu0 0
        %1267 = vmatprep.subr.bf16.mxu0 0
        %1268 = vmatpush1.bf16.msra.mxu0 0
        %1269 = vmatprep.subr.bf16.mxu0 0
        %1270 = vmatpush1.bf16.msra.mxu0 0
        %1271 = vmatprep.subr.bf16.mxu0 0
        %1272 = vmatpush1.bf16.msra.mxu0 0
        %1273 = vmatprep.mubr.bf16.mxu0 0
        %1274 = vmatmul.mubr.bf16.gmra.mrb[0].mxu0 %v1236
        %v1275 = vpop.f32.mrb[0].mxu0
        %v1276 = vadd.f32 0.0, %v1275
        %v1277 = vpop.f32.mrb[0].mxu0
        %v1278 = vpop.f32.mrb[0].mxu0
        %v1279 = vpop.f32.mrb[0].mxu0
        %1280 = vdwg.mxu0
        %v1282 = vsel %vm1061, %v1137, 0
        %v1285 = vsel %vm1145, %v687, 0
        %1287 = vmatprep.subr.bf16.mxu0 0
        %1288 = vmatpush1.bf16.msra.mxu0 %v1285
        %1289 = vmatprep.subr.bf16.mxu0 0
        %1290 = vmatpush1.bf16.msra.mxu0 0
        %1291 = vmatprep.subr.bf16.mxu0 0
        %1292 = vmatpush1.bf16.msra.mxu0 0
        %1293 = vmatprep.subr.bf16.mxu0 0
        %1294 = vmatpush1.bf16.msra.mxu0 0
        %1295 = vmatprep.subr.bf16.mxu0 0
        %1296 = vmatpush1.bf16.msra.mxu0 0
        %1297 = vmatprep.subr.bf16.mxu0 0
        %1298 = vmatpush1.bf16.msra.mxu0 0
        %1299 = vmatprep.subr.bf16.mxu0 0
        %1300 = vmatpush1.bf16.msra.mxu0 0
        %1301 = vmatprep.subr.bf16.mxu0 0
        %1302 = vmatpush1.bf16.msra.mxu0 0
        %1303 = vmatprep.subr.bf16.mxu0 0
        %1304 = vmatpush1.bf16.msra.mxu0 0
        %1305 = vmatprep.subr.bf16.mxu0 0
        %1306 = vmatpush1.bf16.msra.mxu0 0
        %1307 = vmatprep.subr.bf16.mxu0 0
        %1308 = vmatpush1.bf16.msra.mxu0 0
        %1309 = vmatprep.subr.bf16.mxu0 0
        %1310 = vmatpush1.bf16.msra.mxu0 0
        %1311 = vmatprep.subr.bf16.mxu0 0
        %1312 = vmatpush1.bf16.msra.mxu0 0
        %1313 = vmatprep.subr.bf16.mxu0 0
        %1314 = vmatpush1.bf16.msra.mxu0 0
        %1315 = vmatprep.subr.bf16.mxu0 0
        %1316 = vmatpush1.bf16.msra.mxu0 0
        %1317 = vmatprep.subr.bf16.mxu0 0
        %1318 = vmatpush1.bf16.msra.mxu0 0
        %1319 = vmatprep.mubr.bf16.mxu0 0
        %1320 = vmatmul.mubr.bf16.gmra.mrb[0].mxu0 %v1282
        %v1321 = vpop.f32.mrb[0].mxu0
        %v1322 = vadd.f32 0.0, %v1321
        %v1323 = vpop.f32.mrb[0].mxu0
        %v1324 = vpop.f32.mrb[0].mxu0
        %v1325 = vpop.f32.mrb[0].mxu0
        %1326 = vdwg.mxu0
        %v1328 = vsel %vm1061, %v1138, 0
        %v1331 = vsel %vm1145, %v688, 0
        %1333 = vmatprep.subr.bf16.mxu0 0
        %1334 = vmatpush1.bf16.msra.mxu0 %v1331
        %1335 = vmatprep.subr.bf16.mxu0 0
        %1336 = vmatpush1.bf16.msra.mxu0 0
        %1337 = vmatprep.subr.bf16.mxu0 0
        %1338 = vmatpush1.bf16.msra.mxu0 0
        %1339 = vmatprep.subr.bf16.mxu0 0
        %1340 = vmatpush1.bf16.msra.mxu0 0
        %1341 = vmatprep.subr.bf16.mxu0 0
        %1342 = vmatpush1.bf16.msra.mxu0 0
        %1343 = vmatprep.subr.bf16.mxu0 0
        %1344 = vmatpush1.bf16.msra.mxu0 0
        %1345 = vmatprep.subr.bf16.mxu0 0
        %1346 = vmatpush1.bf16.msra.mxu0 0
        %1347 = vmatprep.subr.bf16.mxu0 0
        %1348 = vmatpush1.bf16.msra.mxu0 0
        %1349 = vmatprep.subr.bf16.mxu0 0
        %1350 = vmatpush1.bf16.msra.mxu0 0
        %1351 = vmatprep.subr.bf16.mxu0 0
        %1352 = vmatpush1.bf16.msra.mxu0 0
        %1353 = vmatprep.subr.bf16.mxu0 0
        %1354 = vmatpush1.bf16.msra.mxu0 0
        %1355 = vmatprep.subr.bf16.mxu0 0
        %1356 = vmatpush1.bf16.msra.mxu0 0
        %1357 = vmatprep.subr.bf16.mxu0 0
        %1358 = vmatpush1.bf16.msra.mxu0 0
        %1359 = vmatprep.subr.bf16.mxu0 0
        %1360 = vmatpush1.bf16.msra.mxu0 0
        %1361 = vmatprep.subr.bf16.mxu0 0
        %1362 = vmatpush1.bf16.msra.mxu0 0
        %1363 = vmatprep.subr.bf16.mxu0 0
        %1364 = vmatpush1.bf16.msra.mxu0 0
        %1365 = vmatprep.mubr.bf16.mxu0 0
        %1366 = vmatmul.mubr.bf16.gmra.mrb[0].mxu0 %v1328
        %v1367 = vpop.f32.mrb[0].mxu0
        %v1368 = vadd.f32 0.0, %v1367
        %v1369 = vpop.f32.mrb[0].mxu0
        %v1370 = vpop.f32.mrb[0].mxu0
        %v1371 = vpop.f32.mrb[0].mxu0
        %1372 = vdwg.mxu0
        %v1374 = vsel %vm1061, %v1139, 0
        %v1377 = vsel %vm1145, %v689, 0
        %1379 = vmatprep.subr.bf16.mxu0 0
        %1380 = vmatpush1.bf16.msra.mxu0 %v1377
        %1381 = vmatprep.subr.bf16.mxu0 0
        %1382 = vmatpush1.bf16.msra.mxu0 0
        %1383 = vmatprep.subr.bf16.mxu0 0
        %1384 = vmatpush1.bf16.msra.mxu0 0
        %1385 = vmatprep.subr.bf16.mxu0 0
        %1386 = vmatpush1.bf16.msra.mxu0 0
        %1387 = vmatprep.subr.bf16.mxu0 0
        %1388 = vmatpush1.bf16.msra.mxu0 0
        %1389 = vmatprep.subr.bf16.mxu0 0
        %1390 = vmatpush1.bf16.msra.mxu0 0
        %1391 = vmatprep.subr.bf16.mxu0 0
        %1392 = vmatpush1.bf16.msra.mxu0 0
        %1393 = vmatprep.subr.bf16.mxu0 0
        %1394 = vmatpush1.bf16.msra.mxu0 0
        %1395 = vmatprep.subr.bf16.mxu0 0
        %1396 = vmatpush1.bf16.msra.mxu0 0
        %1397 = vmatprep.subr.bf16.mxu0 0
        %1398 = vmatpush1.bf16.msra.mxu0 0
        %1399 = vmatprep.subr.bf16.mxu0 0
        %1400 = vmatpush1.bf16.msra.mxu0 0
        %1401 = vmatprep.subr.bf16.mxu0 0
        %1402 = vmatpush1.bf16.msra.mxu0 0
        %1403 = vmatprep.subr.bf16.mxu0 0
        %1404 = vmatpush1.bf16.msra.mxu0 0
        %1405 = vmatprep.subr.bf16.mxu0 0
        %1406 = vmatpush1.bf16.msra.mxu0 0
        %1407 = vmatprep.subr.bf16.mxu0 0
        %1408 = vmatpush1.bf16.msra.mxu0 0
        %1409 = vmatprep.subr.bf16.mxu0 0
        %1410 = vmatpush1.bf16.msra.mxu0 0
        %1411 = vmatprep.mubr.bf16.mxu0 0
        %1412 = vmatmul.mubr.bf16.gmra.mrb[0].mxu0 %v1374
        %v1413 = vpop.f32.mrb[0].mxu0
        %v1414 = vadd.f32 0.0, %v1413
        %v1415 = vpop.f32.mrb[0].mxu0
        %v1416 = vpop.f32.mrb[0].mxu0
        %v1417 = vpop.f32.mrb[0].mxu0
        %1418 = vdwg.mxu0
        %v1420 = vsel %vm1061, %v1140, 0
        %v1423 = vsel %vm1145, %v690, 0
        %1425 = vmatprep.subr.bf16.mxu0 0
        %1426 = vmatpush1.bf16.msra.mxu0 %v1423
        %1427 = vmatprep.subr.bf16.mxu0 0
        %1428 = vmatpush1.bf16.msra.mxu0 0
        %1429 = vmatprep.subr.bf16.mxu0 0
        %1430 = vmatpush1.bf16.msra.mxu0 0
        %1431 = vmatprep.subr.bf16.mxu0 0
        %1432 = vmatpush1.bf16.msra.mxu0 0
        %1433 = vmatprep.subr.bf16.mxu0 0
        %1434 = vmatpush1.bf16.msra.mxu0 0
        %1435 = vmatprep.subr.bf16.mxu0 0
        %1436 = vmatpush1.bf16.msra.mxu0 0
        %1437 = vmatprep.subr.bf16.mxu0 0
        %1438 = vmatpush1.bf16.msra.mxu0 0
        %1439 = vmatprep.subr.bf16.mxu0 0
        %1440 = vmatpush1.bf16.msra.mxu0 0
        %1441 = vmatprep.subr.bf16.mxu0 0
        %1442 = vmatpush1.bf16.msra.mxu0 0
        %1443 = vmatprep.subr.bf16.mxu0 0
        %1444 = vmatpush1.bf16.msra.mxu0 0
        %1445 = vmatprep.subr.bf16.mxu0 0
        %1446 = vmatpush1.bf16.msra.mxu0 0
        %1447 = vmatprep.subr.bf16.mxu0 0
        %1448 = vmatpush1.bf16.msra.mxu0 0
        %1449 = vmatprep.subr.bf16.mxu0 0
        %1450 = vmatpush1.bf16.msra.mxu0 0
        %1451 = vmatprep.subr.bf16.mxu0 0
        %1452 = vmatpush1.bf16.msra.mxu0 0
        %1453 = vmatprep.subr.bf16.mxu0 0
        %1454 = vmatpush1.bf16.msra.mxu0 0
        %1455 = vmatprep.subr.bf16.mxu0 0
        %1456 = vmatpush1.bf16.msra.mxu0 0
        %1457 = vmatprep.mubr.bf16.mxu0 0
        %1458 = vmatmul.mubr.bf16.gmra.mrb[0].mxu0 %v1420
        %v1459 = vpop.f32.mrb[0].mxu0
        %v1460 = vadd.f32 0.0, %v1459
        %v1461 = vpop.f32.mrb[0].mxu0
        %v1462 = vpop.f32.mrb[0].mxu0
        %v1463 = vpop.f32.mrb[0].mxu0
        %1464 = vdwg.mxu0
        %v1466 = vsel %vm1061, %v1141, 0
        %v1469 = vsel %vm1145, %v691, 0
        %1471 = vmatprep.subr.bf16.mxu0 0
        %1472 = vmatpush1.bf16.msra.mxu0 %v1469
        %1473 = vmatprep.subr.bf16.mxu0 0
        %1474 = vmatpush1.bf16.msra.mxu0 0
        %1475 = vmatprep.subr.bf16.mxu0 0
        %1476 = vmatpush1.bf16.msra.mxu0 0
        %1477 = vmatprep.subr.bf16.mxu0 0
        %1478 = vmatpush1.bf16.msra.mxu0 0
        %1479 = vmatprep.subr.bf16.mxu0 0
        %1480 = vmatpush1.bf16.msra.mxu0 0
        %1481 = vmatprep.subr.bf16.mxu0 0
        %1482 = vmatpush1.bf16.msra.mxu0 0
        %1483 = vmatprep.subr.bf16.mxu0 0
        %1484 = vmatpush1.bf16.msra.mxu0 0
        %1485 = vmatprep.subr.bf16.mxu0 0
        %1486 = vmatpush1.bf16.msra.mxu0 0
        %1487 = vmatprep.subr.bf16.mxu0 0
        %1488 = vmatpush1.bf16.msra.mxu0 0
        %1489 = vmatprep.subr.bf16.mxu0 0
        %1490 = vmatpush1.bf16.msra.mxu0 0
        %1491 = vmatprep.subr.bf16.mxu0 0
        %1492 = vmatpush1.bf16.msra.mxu0 0
        %1493 = vmatprep.subr.bf16.mxu0 0
        %1494 = vmatpush1.bf16.msra.mxu0 0
        %1495 = vmatprep.subr.bf16.mxu0 0
        %1496 = vmatpush1.bf16.msra.mxu0 0
        %1497 = vmatprep.subr.bf16.mxu0 0
        %1498 = vmatpush1.bf16.msra.mxu0 0
        %1499 = vmatprep.subr.bf16.mxu0 0
        %1500 = vmatpush1.bf16.msra.mxu0 0
        %1501 = vmatprep.subr.bf16.mxu0 0
        %1502 = vmatpush1.bf16.msra.mxu0 0
        %1503 = vmatprep.mubr.bf16.mxu0 0
        %1504 = vmatmul.mubr.bf16.gmra.mrb[0].mxu0 %v1466
        %v1505 = vpop.f32.mrb[0].mxu0
        %v1506 = vadd.f32 0.0, %v1505
        %v1507 = vpop.f32.mrb[0].mxu0
        %v1508 = vpop.f32.mrb[0].mxu0
        %v1509 = vpop.f32.mrb[0].mxu0
        %1510 = vdwg.mxu0
        %v1511 = vrcp.pop %v1112
        %v1512 = vrcp.pop %v1115
        %v1513 = vrcp.pop %v1118
        %v1514 = vrcp.pop %v1121
        %v1515 = vrcp.pop %v1124
        %v1516 = vrcp.pop %v1127
        %v1517 = vrcp.pop %v1130
        %v1518 = vrcp.pop %v1133
        %v1519 = vmul.f32 %v1511, 0.088388346
        %v1520 = vmul.f32 %v1512, 0.088388346
        %v1521 = vmul.f32 %v1513, 0.088388346
        %v1522 = vmul.f32 %v1514, 0.088388346
        %v1523 = vmul.f32 %v1515, 0.088388346
        %v1524 = vmul.f32 %v1516, 0.088388346
        %v1525 = vmul.f32 %v1517, 0.088388346
        %v1526 = vmul.f32 %v1518, 0.088388346
        %v1527 = vmul.f32 %v1184, %v1519
        %v1528 = vmul.f32 %v1230, %v1520
        %v1529 = vmul.f32 %v1276, %v1521
        %v1530 = vmul.f32 %v1322, %v1522
        %v1531 = vmul.f32 %v1368, %v1523
        %v1532 = vmul.f32 %v1414, %v1524
        %v1533 = vmul.f32 %v1460, %v1525
        %v1534 = vmul.f32 %v1506, %v1526
        %v1535 = vpack.c.bf16 %v1527, %v1527
        %v1536 = vpack.c.bf16 %v1528, %v1528
        %v1537 = vpack.c.bf16 %v1529, %v1529
        %v1538 = vpack.c.bf16 %v1530, %v1530
        %v1539 = vpack.c.bf16 %v1531, %v1531
        %v1540 = vpack.c.bf16 %v1532, %v1532
        %v1541 = vpack.c.bf16 %v1533, %v1533
        %v1542 = vpack.c.bf16 %v1534, %v1534
        %vm1543 = vcmask 125952
        %1544 = vst.msk [vmem:[#allocation5] sm:$0xf] %vm1543, %v1535
        %v1546 = vunpack.c.l.b16 %v1536
        %v1547 = vpack.c.b16 %v1546, %v1546
        %1548 = vrot.lane.b32.xlu0 %v1547, 16
        %v1549 = vpop.permute.xlu0 %1548
        %vm1551 = vcmask 257152
        %1552 = vst.msk [vmem:[#allocation5] sm:$0xf] %vm1551, %v1549
        %v1554 = vunpack.c.l.b16 %v1537
        %v1555 = vpack.c.b16 %v1554, %v1554
        %1556 = vrot.lane.b32.xlu0 %v1555, 32
        %v1557 = vpop.permute.xlu0 %1556
        %vm1559 = vcmask 388352
        %1560 = vst.msk [vmem:[#allocation5] sm:$0xf] %vm1559, %v1557
        %v1562 = vunpack.c.l.b16 %v1538
        %v1563 = vpack.c.b16 %v1562, %v1562
        %1564 = vrot.lane.b32.xlu0 %v1563, 48
        %v1565 = vpop.permute.xlu0 %1564
        %vm1567 = vcmask 519552
        %1568 = vst.msk [vmem:[#allocation5] sm:$0xf] %vm1567, %v1565
        %v1570 = vunpack.c.l.b16 %v1539
        %v1571 = vpack.c.b16 %v1570, %v1570
        %1572 = vrot.lane.b32.xlu0 %v1571, 64
        %v1573 = vpop.permute.xlu0 %1572
        %vm1575 = vcmask 650752
        %1576 = vst.msk [vmem:[#allocation5] sm:$0xf] %vm1575, %v1573
        %v1578 = vunpack.c.l.b16 %v1540
        %v1579 = vpack.c.b16 %v1578, %v1578
        %1580 = vrot.lane.b32.xlu0 %v1579, 80
        %v1581 = vpop.permute.xlu0 %1580
        %vm1583 = vcmask 781952
        %1584 = vst.msk [vmem:[#allocation5] sm:$0xf] %vm1583, %v1581
        %v1586 = vunpack.c.l.b16 %v1541
        %v1587 = vpack.c.b16 %v1586, %v1586
        %1588 = vrot.lane.b32.xlu0 %v1587, 96
        %v1589 = vpop.permute.xlu0 %1588
        %vm1591 = vcmask 913152
        %1592 = vst.msk [vmem:[#allocation5] sm:$0xf] %vm1591, %v1589
        %v1594 = vunpack.c.l.b16 %v1542
        %v1595 = vpack.c.b16 %v1594, %v1594
        %1596 = vrot.lane.b32.xlu0 %v1595, 112
        %v1597 = vpop.permute.xlu0 %1596
        %vm1599 = vcmask 1044352
        %1600 = vst.msk [vmem:[#allocation5] sm:$0xf] %vm1599, %v1597
        %v1601 = vld [vmem:[#allocation5] sm:$0xf]
        %v1602 = vld [vmem:[#allocation11] sm:$0xf]
        %v1603 = vld [vmem:[#allocation11 + $0x4] sm:$0xf]
        %v1604 = vld [vmem:[#allocation11 + $0x8] sm:$0xf]
        %v1605 = vld [vmem:[#allocation11 + $0xc] sm:$0xf]
        %v1606 = vld [vmem:[#allocation11 + $0x10] sm:$0xf]
        %v1607 = vld [vmem:[#allocation11 + $0x14] sm:$0xf]
        %v1608 = vld [vmem:[#allocation11 + $0x18] sm:$0xf]
        %v1609 = vld [vmem:[#allocation11 + $0x1c] sm:$0xf]
        %v1610 = vld [vmem:[#allocation11 + $0x20] sm:$0xf]
        %v1611 = vld [vmem:[#allocation11 + $0x24] sm:$0xf]
        %v1612 = vld [vmem:[#allocation11 + $0x28] sm:$0xf]
        %v1613 = vld [vmem:[#allocation11 + $0x2c] sm:$0xf]
        %v1614 = vld [vmem:[#allocation11 + $0x30] sm:$0xf]
        %v1615 = vld [vmem:[#allocation11 + $0x34] sm:$0xf]
        %v1616 = vld [vmem:[#allocation11 + $0x38] sm:$0xf]
        %v1617 = vld [vmem:[#allocation11 + $0x3c] sm:$0xf]
        %v1618 = vld [vmem:[%s4] sm:$0x1]
        %v1620 = vlaneseq
        %v1621 = vshrl.u32 %v1620, 7
        %v1622 = vsub.s32 0, %v1621
        %v1623 = vrot.slane %v1618, %v1622
        %v1641 = vunpack.c.l.b16 %v1602
        %v1642 = vunpack.c.l.b16 %v1603
        %v1643 = vunpack.c.l.b16 %v1604
        %v1644 = vunpack.c.l.b16 %v1605
        %v1645 = vunpack.c.l.b16 %v1606
        %v1646 = vunpack.c.l.b16 %v1607
        %v1647 = vunpack.c.l.b16 %v1608
        %v1648 = vunpack.c.l.b16 %v1609
        %v1649 = vunpack.c.l.b16 %v1610
        %v1650 = vunpack.c.l.b16 %v1611
        %v1651 = vunpack.c.l.b16 %v1612
        %v1652 = vunpack.c.l.b16 %v1613
        %v1653 = vunpack.c.l.b16 %v1614
        %v1654 = vunpack.c.l.b16 %v1615
        %v1655 = vunpack.c.l.b16 %v1616
        %v1656 = vunpack.c.l.b16 %v1617
        %v1657 = vpack.c.b16 %v1642, %v1641
        %v1658 = vpack.c.b16 %v1644, %v1643
        %v1659 = vpack.c.b16 %v1646, %v1645
        %v1660 = vpack.c.b16 %v1648, %v1647
        %v1661 = vpack.c.b16 %v1650, %v1649
        %v1662 = vpack.c.b16 %v1652, %v1651
        %v1663 = vpack.c.b16 %v1654, %v1653
        %v1664 = vpack.c.b16 %v1656, %v1655
        %1673 = vmatprep.subr.bf16.mxu0 0
        %1674 = vmatpush1.bf16.msra.mxu0 %v1657
        %1675 = vmatprep.subr.bf16.mxu0 0
        %1676 = vmatpush1.bf16.msra.mxu0 %v1658
        %1677 = vmatprep.subr.bf16.mxu0 0
        %1678 = vmatpush1.bf16.msra.mxu0 %v1659
        %1679 = vmatprep.subr.bf16.mxu0 0
        %1680 = vmatpush1.bf16.msra.mxu0 %v1660
        %1681 = vmatprep.subr.bf16.mxu0 0
        %1682 = vmatpush1.bf16.msra.mxu0 %v1661
        %1683 = vmatprep.subr.bf16.mxu0 0
        %1684 = vmatpush1.bf16.msra.mxu0 %v1662
        %1685 = vmatprep.subr.bf16.mxu0 0
        %1686 = vmatpush1.bf16.msra.mxu0 %v1663
        %1687 = vmatprep.subr.bf16.mxu0 0
        %1688 = vmatpush1.bf16.msra.mxu0 %v1664
        %1689 = vmatprep.subr.bf16.mxu0 0
        %1690 = vmatpush1.bf16.msra.mxu0 0
        %1691 = vmatprep.subr.bf16.mxu0 0
        %1692 = vmatpush1.bf16.msra.mxu0 0
        %1693 = vmatprep.subr.bf16.mxu0 0
        %1694 = vmatpush1.bf16.msra.mxu0 0
        %1695 = vmatprep.subr.bf16.mxu0 0
        %1696 = vmatpush1.bf16.msra.mxu0 0
        %1697 = vmatprep.subr.bf16.mxu0 0
        %1698 = vmatpush1.bf16.msra.mxu0 0
        %1699 = vmatprep.subr.bf16.mxu0 0
        %1700 = vmatpush1.bf16.msra.mxu0 0
        %1701 = vmatprep.subr.bf16.mxu0 0
        %1702 = vmatpush1.bf16.msra.mxu0 0
        %1703 = vmatprep.subr.bf16.mxu0 0
        %1704 = vmatpush1.bf16.msra.mxu0 0
        %1705 = vmatprep.mubr.bf16.mxu0 0
        %1706 = vmatmul.mubr.bf16.gmra.mrb[0].mxu0 %v1601
        %v1707 = vpop.f32.mrb[0].mxu0
        %v1708 = vadd.f32 %v1623, %v1707
        %v1709 = vpop.f32.mrb[0].mxu0
        %v1710 = vpop.f32.mrb[0].mxu0
        %v1711 = vpop.f32.mrb[0].mxu0
        %1712 = vdwg.mxu0
        %1713 = vst [vmem:[%s282] sm:$0xff] %v1708
        %s1714 = sand.u32 %s155, 1
        %s1715 = scalar_lea.sflag [#allocation8], %s1714
        %s1716 = sand.u32 %s155, 1
        %s1717 = smul.addr %s1716, 8
        %s1718 = scalar_lea.vmem [#allocation12], %s1717
        // Predicated region
        $region57: #{tpu_custom_call.1} parent=39 // pred_check
          %p1719 = pneg %p165
        $region58: #{tpu_custom_call.1} parent=39 // pred_check_branch
          %1721 = sbr.rel (%p1719) target = $region60
        $region59: #{tpu_custom_call.1} parent=39 // pred_region
          %s1723 = ssub.s32 128, 128
          %1724 = vsyncadd %s1715, %s1723
          %s1725 = sadd.s32 %s28, %s27
          %s1726 = smul.addr %s1725, 128
          %s1727 = scalar_lea.hbm %s5, %s1726
          %s1729 = sshll.u32 %s1718, 4
          %s1730 = int_to_ptr.vmem [resolvable:$true] %s1729
          %1732 = dma.vmem_to_hbm [thread:$0]  %s1730, 128, %s1727, %s1715
        $region60: #{tpu_custom_call.1} parent=39 // pred_fallthru
          _
      $region40: #{tpu_custom_call.1} parent=5 // pred_fallthru
        _
      %p1733 = scmp.le.s32.totalorder 2, %s18
      // Predicated region
      $region61: #{tpu_custom_call.1} parent=5 // pred_check
        %p1734 = pneg %p1733
      $region62: #{tpu_custom_call.1} parent=5 // pred_check_branch
        %1736 = sbr.rel (%p1734) target = $region64
      $region63: #{tpu_custom_call.1} parent=5 // pred_region
        %s1737 = ssub.s32 %s18, 2
        // Predicated region
        $region65: #{tpu_custom_call.1} parent=63 // pred_check
          %p1738 = pneg %p171
        $region66: #{tpu_custom_call.1} parent=63 // pred_check_branch
          %1740 = sbr.rel (%p1738) target = $region68
        $region67: #{tpu_custom_call.1} parent=63 // pred_region
          %s1741 = sand.u32 %s156, 1
          %s1742 = scalar_lea.sflag [#allocation8], %s1741
          %s1743 = sand.u32 %s156, 1
          %s1744 = smul.addr %s1743, 8
          %s1745 = scalar_lea.vmem [#allocation12], %s1744
          %1746 = dma.done %s1742, 128
        $region68: #{tpu_custom_call.1} parent=63 // pred_fallthru
          _
      $region64: #{tpu_custom_call.1} parent=5 // pred_fallthru
        _
    $region6: #{tpu_custom_call.1} parent=1 // loop_footer
      %s22 = sadd.s32 1, %s18
    $region7: #{tpu_custom_call.1} parent=1 // loop_footer_branch
      %17 = sbr.rel target = $region3
    $region8: #{tpu_custom_call.1} parent=1 // loop_exit
      _
    %1747 = vsyncpa [#allocation7], 1
    %s1748 = scalar_lea.sflag [#allocation7], 1
    %1749 = vsyncpa %s1748, 1
    %1750 = vsyncpa [#allocation10], 1
    %1751 = vsyncpa [#allocation8], 1
    %s1752 = scalar_lea.sflag [#allocation8], 1
    %1753 = vsyncpa %s1752, 1

</llo_original>
